<compile_context>
chip_gen: v7x
topology: tpu7x:2x2x1
jax: 0.10.0
libtpu: 0.0.40
codegen_flags: <defaults>
</compile_context>

<pallas_src>
import functools
import math

import jax
import jax.numpy as jnp
from jax.experimental import pallas as pl
from jax.experimental.pallas import tpu as pltpu

EPS = 1e-5  # config.layer_norm_epsilon


def _layernorm(x, g, b):
    mu = jnp.mean(x, axis=-1, keepdims=True)
    var = jnp.mean((x - mu) ** 2, axis=-1, keepdims=True)
    return (x - mu) * jax.lax.rsqrt(var + EPS) * g + b


def _gelu_new(x):
    return 0.5 * x * (1.0 + jnp.tanh(jnp.sqrt(2.0 / jnp.pi) * (x + 0.044715 * x ** 3)))


def _largest_divisor_leq(n, cap):
    cap = max(1, min(n, cap))
    for d in range(cap, 0, -1):
        if n % d == 0:
            return d
    return n


def block_kernel(num_heads, compute_dtype, inner_chunk_target,
                 h_ref, act_ref,
                 w_act_ref, b_act_ref, g_aln_ref, b_aln_ref,
                 g1_ref, b1_ref,
                 w_qkv_ref, b_qkv_ref,
                 w_ap_ref, b_ap_ref,
                 g2_ref, b2_ref,
                 w_fc_ref, b_fc_ref, w_fp_ref, b_fp_ref,
                 o_ref):
    Bb, T, H = h_ref.shape
    nh = num_heads
    hd = H // nh
    M = Bb * T
    A = act_ref.shape[-1]
    f32 = jnp.float32
    cdt = compute_dtype

    x = h_ref[...].astype(f32)                      # (Bb, T, H)
    xf = x.reshape(M, H)                            # fold batch into MXU M dim

    # ln_1 over all Bb*T rows at once (f32 elementwise; v5e-safe)
    ln1 = _layernorm(xf, g1_ref[...].astype(f32), b1_ref[...].astype(f32))

    # act_proc_layer_block: Conv1D(A -> H) + LayerNorm   (Bb rows)
    a = act_ref[...].reshape(Bb, A)
    a = jnp.dot(a.astype(cdt), w_act_ref[...].astype(cdt),
                preferred_element_type=f32) + b_act_ref[...].astype(f32)
    a = _layernorm(a, g_aln_ref[...].astype(f32), b_aln_ref[...].astype(f32))   # (Bb, H)

    # Fused QKV projection: one N=3H matmul for the tokens and one tiny one for
    # the activation row (its query is dropped; it contributes K/V only).
    w_qkv = w_qkv_ref[...].astype(cdt)
    b_qkv = b_qkv_ref[...].astype(f32)
    qkv = jnp.dot(ln1.astype(cdt), w_qkv, preferred_element_type=f32) + b_qkv    # (M, 3H)
    qkva = jnp.dot(a.astype(cdt), w_qkv, preferred_element_type=f32) + b_qkv     # (Bb, 3H)

    scale = 1.0 / math.sqrt(hd)                     # scale_attn_weights
    q3 = (qkv[:, :H] * scale).reshape(Bb, T, H)
    k3 = qkv[:, H:2 * H].reshape(Bb, T, H)
    v3 = qkv[:, 2 * H:].reshape(Bb, T, H)
    ka3 = qkva[:, H:2 * H].reshape(Bb, 1, H)
    va3 = qkva[:, 2 * H:].reshape(Bb, 1, H)

    # Additive causal bias, built and broadcast ONCE (hoisted out of the head
    # loop). The activation column is always visible so every row has at least
    # one finite key.
    qi = jax.lax.broadcasted_iota(jnp.int32, (T, T), 0)
    ki = jax.lax.broadcasted_iota(jnp.int32, (T, T), 1)
    bias2d = jnp.where(ki <= qi, 0.0, -1e30).astype(f32)
    bias = jnp.broadcast_to(bias2d[None], (Bb, T, T))

    # Attention. c_proj is accumulated per head ((M,hd) x (hd,H) partial
    # matmuls) so there is no lane-width head concat.
    # TODO(synk): a fully head-batched 4-D einsum would remove the per-head
    # lane slices too once Mosaic supports multi-batch dot_general / the
    # (0,2,1,3) transpose; kept per-head + accumulate for portability.
    attn_acc = jnp.zeros((M, H), f32)
    for h in range(nh):
        sl = slice(h * hd, (h + 1) * hd)
        qh, kh, vh = q3[:, :, sl], k3[:, :, sl], v3[:, :, sl]
        kah, vah = ka3[:, :, sl], va3[:, :, sl]

        s = jnp.einsum('btd,bsd->bts', qh.astype(cdt), kh.astype(cdt),
                       preferred_element_type=f32) + bias                 # (Bb,T,T)
        sa = jnp.sum(qh * kah, axis=-1, keepdims=True)                    # (Bb,T,1)

        m = jnp.maximum(jnp.max(s, axis=-1, keepdims=True), sa)
        p = jnp.exp(s - m)
        pa = jnp.exp(sa - m)
        denom = jnp.sum(p, axis=-1, keepdims=True) + pa
        inv = pl.reciprocal(denom, approx=True)
        inv = inv * (2.0 - denom * inv)             # one Newton step -> ~1e-6 rel err
        oh = (jnp.einsum('bts,bsd->btd', p.astype(cdt), vh.astype(cdt),
                         preferred_element_type=f32) + pa * vah) * inv    # (Bb,T,hd)

        attn_acc = attn_acc + jnp.dot(oh.reshape(M, hd).astype(cdt),
                                      w_ap_ref[sl, :].astype(cdt),
                                      preferred_element_type=f32)

    # c_proj bias + first residual
    h1 = attn_acc + b_ap_ref[...].astype(f32) + xf

    # ln_2 + MLP (Conv1D -> gelu_new -> Conv1D), K-tiled over INNER so the
    # (M, chunk) intermediate stays bounded; gelu stays f32 (v5e-safe).
    # TODO(synk): on v6e/v7x the gelu/exp elementwise work could run in bf16.
    ln2 = _layernorm(h1, g2_ref[...].astype(f32), b2_ref[...].astype(f32))
    ln2c = ln2.astype(cdt)
    inner = w_fc_ref.shape[1]
    chunk = _largest_divisor_leq(inner, inner_chunk_target)
    ff_acc = jnp.zeros((M, H), f32)
    for c in range(inner // chunk):
        lo = c * chunk
        ffc = jnp.dot(ln2c, w_fc_ref[:, lo:lo + chunk].astype(cdt),
                      preferred_element_type=f32) + b_fc_ref[:, lo:lo + chunk].astype(f32)
        ffc = _gelu_new(ffc)
        ff_acc = ff_acc + jnp.dot(ffc.astype(cdt),
                                  w_fp_ref[lo:lo + chunk, :].astype(cdt),
                                  preferred_element_type=f32)
    ff = ff_acc + b_fp_ref[...].astype(f32)

    o_ref[...] = (h1 + ff).reshape(Bb, T, H).astype(o_ref.dtype)


def prepare_block_params(params, compute_dtype=jnp.bfloat16):
    """One-time host-side prep (keep out of the per-call path).

    Big matmul weights go to `compute_dtype` (bf16 halves DMA bytes and VMEM
    residency; the MXU is bf16-native on v5e/v6e/v7x). Biases and LayerNorm
    params stay f32. w_qkv stays FUSED; the 1/sqrt(hd) scale is applied
    in-kernel with one VPU multiply.
    """
    f32 = jnp.float32
    cd = compute_dtype
    p = params
    return (p['w_act'].astype(cd), p['b_act'].astype(f32),
            p['g_act_ln'].astype(f32), p['b_act_ln'].astype(f32),
            p['g_ln1'].astype(f32), p['b_ln1'].astype(f32),
            p['w_qkv'].astype(cd), p['b_qkv'].astype(f32),
            p['w_attn_proj'].astype(cd), p['b_attn_proj'].astype(f32),
            p['g_ln2'].astype(f32), p['b_ln2'].astype(f32),
            p['w_fc'].astype(cd), p['b_fc'].astype(f32),
            p['w_fc_proj'].astype(cd), p['b_fc_proj'].astype(f32))


def _pick_bb(B, T, max_rows):
    cap = max(1, max_rows // max(T, 1))
    divisors = [d for d in range(1, B + 1) if B % d == 0 and d <= cap] or [1]

    def score(d):
        g = B // d
        # Prefer a grid that is >= 2 and even so both v7x TensorCores get work
        # (neutral on v5e/v6e single-TC); then the largest batch fold.
        return (g >= 2 and g % 2 == 0, g >= 2, d)

    return max(divisors, key=score)


def _full_spec(arr):
    nd = arr.ndim
    # TODO(synk): pipeline_mode=pl.Buffered(1) on these constant-index weight
    # specs would drop their double buffer on v7x (64 MiB/TC); left at the
    # default here for portability.
    return pl.BlockSpec(arr.shape, lambda b, _nd=nd: (0,) * _nd)


def attn_act_gpt2_block(hidden, activation, weight_args, num_heads, *,
                        compute_dtype=jnp.bfloat16, max_rows=512,
                        inner_chunk=1024, vmem_limit_bytes=48 * 1024 * 1024):
    """hidden: (B, T, H); activation: (B, A). weight_args from prepare_block_params."""
    B, T, H = hidden.shape
    A = activation.shape[-1]
    assert H % num_heads == 0

    # TODO(synk): on v6e (128 MiB VMEM) raise max_rows toward 1024-2048 and
    # vmem_limit_bytes toward ~96 MiB for bigger M slabs per grid step.
    bb = _pick_bb(B, T, max_rows)
    grid = (B // bb,)
    act3 = activation.reshape(B, 1, A)

    in_specs = [pl.BlockSpec((bb, T, H), lambda b: (b, 0, 0)),
                pl.BlockSpec((bb, 1, A), lambda b: (b, 0, 0))]
    in_specs += [_full_spec(w) for w in weight_args]

    kernel = functools.partial(block_kernel, num_heads, compute_dtype, inner_chunk)
    return pl.pallas_call(
        kernel,
        out_shape=jax.ShapeDtypeStruct((B, T, H), hidden.dtype),
        grid_spec=pltpu.PrefetchScalarGridSpec(
            num_scalar_prefetch=0,
            grid=grid,
            in_specs=in_specs,
            out_specs=pl.BlockSpec((bb, T, H), lambda b: (b, 0, 0)),
        ),
        compiler_params=pltpu.CompilerParams(
            dimension_semantics=("parallel",),
            vmem_limit_bytes=vmem_limit_bytes),
    )(hidden, act3, *weight_args)


def reference(hidden, activation, params, num_heads):
    """Pure-JAX f32 reference matching the PyTorch forward (use_cache=False)."""
    B, T, H = hidden.shape
    hd = H // num_heads
    residual = hidden
    ln1 = _layernorm(hidden, params['g_ln1'][0], params['b_ln1'][0])
    a = activation @ params['w_act'] + params['b_act'][0]
    a = _layernorm(a, params['g_act_ln'][0], params['b_act_ln'][0])
    x_ext = jnp.concatenate([a[:, None, :], ln1], axis=1)           # (B, T+1, H)
    qkv = x_ext @ params['w_qkv'] + params['b_qkv'][0]
    q = qkv[:, 1:, :H]
    k = qkv[:, :, H:2 * H]
    v = qkv[:, :, 2 * H:]

    def split(t):
        return t.reshape(t.shape[0], t.shape[1], num_heads, hd).transpose(0, 2, 1, 3)

    qh, kh, vh = split(q), split(k), split(v)
    s = jnp.einsum('bhqd,bhkd->bhqk', qh, kh) / jnp.sqrt(jnp.float32(hd))
    Tk = T + 1
    causal = jnp.arange(Tk)[None, :] <= jnp.arange(T)[:, None] + (Tk - T)
    s = jnp.where(causal, s, jnp.finfo(jnp.float32).min)
    pmat = jax.nn.softmax(s, axis=-1)
    o = jnp.einsum('bhqk,bhkd->bhqd', pmat, vh)
    o = o.transpose(0, 2, 1, 3).reshape(B, T, H)
    o = o @ params['w_attn_proj'] + params['b_attn_proj'][0]
    h1 = o + residual
    ln2 = _layernorm(h1, params['g_ln2'][0], params['b_ln2'][0])
    ff = _gelu_new(ln2 @ params['w_fc'] + params['b_fc'][0])
    ff = ff @ params['w_fc_proj'] + params['b_fc_proj'][0]
    return h1 + ff


if __name__ == "__main__":
    B, T, H = 2, 8, 32          # batch, seq, hidden_size
    NUM_HEADS = 4               # config.num_attention_heads
    INNER = 4 * H               # config.n_inner (None -> 4*hidden)
    A = 16                      # config.act_proc_resid_dim

    key = jax.random.PRNGKey(0)
    ks = jax.random.split(key, 16)
    f32 = jnp.float32
    params = {
        # act_proc_layer_block: Conv1D(A -> H) + LayerNorm(H)
        'w_act':       0.02 * jax.random.normal(ks[0], (A, H), f32),
        'b_act':       0.01 * jax.random.normal(ks[1], (1, H), f32),
        'g_act_ln':    1.0 + 0.05 * jax.random.normal(ks[2], (1, H), f32),
        'b_act_ln':    0.01 * jax.random.normal(ks[3], (1, H), f32),
        # ln_1
        'g_ln1':       1.0 + 0.05 * jax.random.normal(ks[4], (1, H), f32),
        'b_ln1':       0.01 * jax.random.normal(ks[5], (1, H), f32),
        # attn.c_attn (H -> 3H), attn.c_proj (H -> H)
        'w_qkv':       0.02 * jax.random.normal(ks[6], (H, 3 * H), f32),
        'b_qkv':       0.01 * jax.random.normal(ks[7], (1, 3 * H), f32),
        'w_attn_proj': 0.02 * jax.random.normal(ks[8], (H, H), f32),
        'b_attn_proj': 0.01 * jax.random.normal(ks[9], (1, H), f32),
        # ln_2
        'g_ln2':       1.0 + 0.05 * jax.random.normal(ks[10], (1, H), f32),
        'b_ln2':       0.01 * jax.random.normal(ks[11], (1, H), f32),
        # mlp.c_fc (H -> 4H), mlp.c_proj (4H -> H)
        'w_fc':        0.02 * jax.random.normal(ks[12], (H, INNER), f32),
        'b_fc':        0.01 * jax.random.normal(ks[13], (1, INNER), f32),
        'w_fc_proj':   0.02 * jax.random.normal(ks[14], (INNER, H), f32),
        'b_fc_proj':   0.01 * jax.random.normal(ks[15], (1, H), f32),
    }

    dkey = jax.random.PRNGKey(42)
    dk0, dk1 = jax.random.split(dkey)
    hidden = jax.random.normal(dk0, (B, T, H), f32)
    activation = jax.random.normal(dk1, (B, A), f32)

    ref = reference(hidden, activation, params, NUM_HEADS)

    # f32 compute path: tight numerical check against the pure-JAX reference.
    w_f32 = prepare_block_params(params, jnp.float32)
    out_f32 = jax.block_until_ready(
        attn_act_gpt2_block(hidden, activation, w_f32, NUM_HEADS,
                            compute_dtype=jnp.float32))
    assert out_f32.shape == (B, T, H)
    assert jnp.allclose(out_f32, ref, rtol=1e-4, atol=1e-4), (
        f"f32 max abs err {jnp.max(jnp.abs(out_f32 - ref))}")

    # bf16 matmul-operand path (production perf path): looser tolerance.
    w_bf16 = prepare_block_params(params, jnp.bfloat16)
    out_bf16 = jax.block_until_ready(
        attn_act_gpt2_block(hidden, activation, w_bf16, NUM_HEADS,
                            compute_dtype=jnp.bfloat16))
    assert out_bf16.shape == (B, T, H)
    assert jnp.allclose(out_bf16, ref, rtol=5e-2, atol=5e-2), (
        f"bf16 max abs err {jnp.max(jnp.abs(out_bf16 - ref))}")

    print("KERNEL_OK")
</pallas_src>

<mosaic_0001>
module attributes {stable_mosaic.version = 11 : i64} {
  func.func @block_kernel(%arg0: i32, %arg1: memref<1x8x32xf32, #tpu.memory_space<vmem>>, %arg2: memref<1x1x16xf32, #tpu.memory_space<vmem>>, %arg3: memref<16x32xf32, #tpu.memory_space<vmem>>, %arg4: memref<1x32xf32, #tpu.memory_space<vmem>>, %arg5: memref<1x32xf32, #tpu.memory_space<vmem>>, %arg6: memref<1x32xf32, #tpu.memory_space<vmem>>, %arg7: memref<1x32xf32, #tpu.memory_space<vmem>>, %arg8: memref<1x32xf32, #tpu.memory_space<vmem>>, %arg9: memref<32x96xf32, #tpu.memory_space<vmem>>, %arg10: memref<1x96xf32, #tpu.memory_space<vmem>>, %arg11: memref<32x32xf32, #tpu.memory_space<vmem>>, %arg12: memref<1x32xf32, #tpu.memory_space<vmem>>, %arg13: memref<1x32xf32, #tpu.memory_space<vmem>>, %arg14: memref<1x32xf32, #tpu.memory_space<vmem>>, %arg15: memref<32x128xf32, #tpu.memory_space<vmem>>, %arg16: memref<1x128xf32, #tpu.memory_space<vmem>>, %arg17: memref<128x32xf32, #tpu.memory_space<vmem>>, %arg18: memref<1x32xf32, #tpu.memory_space<vmem>>, %arg19: memref<1x8x32xf32, #tpu.memory_space<vmem>>) attributes {dimension_semantics = [#tpu.dimension_semantics<parallel>], iteration_bounds = array<i64: 2>, scalar_prefetch = 0 : i64, scratch_operands = 0 : i64, tpu.core_type = #tpu.core_type<tc>, window_params = [{transform_indices = @transform_0, window_bounds = array<i64: 1, 8, 32>}, {transform_indices = @transform_1, window_bounds = array<i64: 1, 1, 16>}, {pipeline_mode = #tpu.pipeline_mode<synchronous>, transform_indices = @transform_2, window_bounds = array<i64: 16, 32>}, {pipeline_mode = #tpu.pipeline_mode<synchronous>, transform_indices = @transform_3, window_bounds = array<i64: 1, 32>}, {pipeline_mode = #tpu.pipeline_mode<synchronous>, transform_indices = @transform_4, window_bounds = array<i64: 1, 32>}, {pipeline_mode = #tpu.pipeline_mode<synchronous>, transform_indices = @transform_5, window_bounds = array<i64: 1, 32>}, {pipeline_mode = #tpu.pipeline_mode<synchronous>, transform_indices = @transform_6, window_bounds = array<i64: 1, 32>}, {pipeline_mode = #tpu.pipeline_mode<synchronous>, transform_indices = @transform_7, window_bounds = array<i64: 1, 32>}, {pipeline_mode = #tpu.pipeline_mode<synchronous>, transform_indices = @transform_8, window_bounds = array<i64: 32, 96>}, {pipeline_mode = #tpu.pipeline_mode<synchronous>, transform_indices = @transform_9, window_bounds = array<i64: 1, 96>}, {pipeline_mode = #tpu.pipeline_mode<synchronous>, transform_indices = @transform_10, window_bounds = array<i64: 32, 32>}, {pipeline_mode = #tpu.pipeline_mode<synchronous>, transform_indices = @transform_11, window_bounds = array<i64: 1, 32>}, {pipeline_mode = #tpu.pipeline_mode<synchronous>, transform_indices = @transform_12, window_bounds = array<i64: 1, 32>}, {pipeline_mode = #tpu.pipeline_mode<synchronous>, transform_indices = @transform_13, window_bounds = array<i64: 1, 32>}, {pipeline_mode = #tpu.pipeline_mode<synchronous>, transform_indices = @transform_14, window_bounds = array<i64: 32, 128>}, {pipeline_mode = #tpu.pipeline_mode<synchronous>, transform_indices = @transform_15, window_bounds = array<i64: 1, 128>}, {pipeline_mode = #tpu.pipeline_mode<synchronous>, transform_indices = @transform_16, window_bounds = array<i64: 128, 32>}, {pipeline_mode = #tpu.pipeline_mode<synchronous>, transform_indices = @transform_17, window_bounds = array<i64: 1, 32>}, {transform_indices = @transform_18, window_bounds = array<i64: 1, 8, 32>}]} {
    %c0 = arith.constant 0 : index
    %c0_0 = arith.constant 0 : index
    %c0_1 = arith.constant 0 : index
    %0 = vector.load %arg1[%c0, %c0_0, %c0_1] : memref<1x8x32xf32, #tpu.memory_space<vmem>>, vector<1x8x32xf32>
    %1 = vector.shape_cast %0 : vector<1x8x32xf32> to vector<8x32xf32>
    %c0_2 = arith.constant 0 : index
    %c0_3 = arith.constant 0 : index
    %2 = vector.load %arg7[%c0_2, %c0_3] : memref<1x32xf32, #tpu.memory_space<vmem>>, vector<1x32xf32>
    %c0_4 = arith.constant 0 : index
    %c0_5 = arith.constant 0 : index
    %3 = vector.load %arg8[%c0_4, %c0_5] : memref<1x32xf32, #tpu.memory_space<vmem>>, vector<1x32xf32>
    %cst = arith.constant dense<0.000000e+00> : vector<8xf32>
    %4 = vector.multi_reduction <add>, %1, %cst [1] : vector<8x32xf32> to vector<8xf32>
    %5 = vector.shape_cast %4 : vector<8xf32> to vector<8x1xf32>
    %cst_6 = arith.constant 3.200000e+01 : f32
    %6 = vector.broadcast %cst_6 : f32 to vector<8x1xf32>
    %7 = arith.divf %5, %6 : vector<8x1xf32>
    %8 = vector.broadcast %7 : vector<8x1xf32> to vector<8x32xf32>
    %9 = arith.subf %1, %8 : vector<8x32xf32>
    %10 = arith.mulf %9, %9 : vector<8x32xf32>
    %cst_7 = arith.constant dense<0.000000e+00> : vector<8xf32>
    %11 = vector.multi_reduction <add>, %10, %cst_7 [1] : vector<8x32xf32> to vector<8xf32>
    %12 = vector.shape_cast %11 : vector<8xf32> to vector<8x1xf32>
    %cst_8 = arith.constant 3.200000e+01 : f32
    %13 = vector.broadcast %cst_8 : f32 to vector<8x1xf32>
    %14 = arith.divf %12, %13 : vector<8x1xf32>
    %15 = vector.broadcast %7 : vector<8x1xf32> to vector<8x32xf32>
    %16 = arith.subf %1, %15 : vector<8x32xf32>
    %cst_9 = arith.constant 9.99999974E-6 : f32
    %17 = vector.broadcast %cst_9 : f32 to vector<8x1xf32>
    %18 = arith.addf %14, %17 : vector<8x1xf32>
    %19 = math.rsqrt %18 : vector<8x1xf32>
    %20 = vector.broadcast %19 : vector<8x1xf32> to vector<8x32xf32>
    %21 = arith.mulf %16, %20 : vector<8x32xf32>
    %22 = vector.broadcast %2 : vector<1x32xf32> to vector<8x32xf32>
    %23 = arith.mulf %21, %22 : vector<8x32xf32>
    %24 = vector.broadcast %3 : vector<1x32xf32> to vector<8x32xf32>
    %25 = arith.addf %23, %24 : vector<8x32xf32>
    %c0_10 = arith.constant 0 : index
    %c0_11 = arith.constant 0 : index
    %c0_12 = arith.constant 0 : index
    %26 = vector.load %arg2[%c0_10, %c0_11, %c0_12] : memref<1x1x16xf32, #tpu.memory_space<vmem>>, vector<1x1x16xf32>
    %27 = vector.shape_cast %26 : vector<1x1x16xf32> to vector<1x16xf32>
    %c0_13 = arith.constant 0 : index
    %c0_14 = arith.constant 0 : index
    %28 = vector.load %arg3[%c0_13, %c0_14] : memref<16x32xf32, #tpu.memory_space<vmem>>, vector<16x32xf32>
    %cst_15 = arith.constant dense<0.000000e+00> : vector<1x32xf32>
    %29 = tpu.matmul %27, %28, %cst_15 {dimension_numbers = #tpu.dot_dimension_numbers<[1], [0], [0], [1], [0, 0, 1, 1], [], []>} : vector<1x16xf32>, vector<16x32xf32>, vector<1x32xf32> -> vector<1x32xf32>
    %c0_16 = arith.constant 0 : index
    %c0_17 = arith.constant 0 : index
    %30 = vector.load %arg4[%c0_16, %c0_17] : memref<1x32xf32, #tpu.memory_space<vmem>>, vector<1x32xf32>
    %31 = arith.addf %29, %30 : vector<1x32xf32>
    %c0_18 = arith.constant 0 : index
    %c0_19 = arith.constant 0 : index
    %32 = vector.load %arg5[%c0_18, %c0_19] : memref<1x32xf32, #tpu.memory_space<vmem>>, vector<1x32xf32>
    %c0_20 = arith.constant 0 : index
    %c0_21 = arith.constant 0 : index
    %33 = vector.load %arg6[%c0_20, %c0_21] : memref<1x32xf32, #tpu.memory_space<vmem>>, vector<1x32xf32>
    %cst_22 = arith.constant dense<0.000000e+00> : vector<1xf32>
    %34 = vector.multi_reduction <add>, %31, %cst_22 [1] : vector<1x32xf32> to vector<1xf32>
    %35 = vector.shape_cast %34 : vector<1xf32> to vector<1x1xf32>
    %cst_23 = arith.constant 3.200000e+01 : f32
    %36 = vector.broadcast %cst_23 : f32 to vector<1x1xf32>
    %37 = arith.divf %35, %36 : vector<1x1xf32>
    %38 = vector.broadcast %37 : vector<1x1xf32> to vector<1x32xf32>
    %39 = arith.subf %31, %38 : vector<1x32xf32>
    %40 = arith.mulf %39, %39 : vector<1x32xf32>
    %cst_24 = arith.constant dense<0.000000e+00> : vector<1xf32>
    %41 = vector.multi_reduction <add>, %40, %cst_24 [1] : vector<1x32xf32> to vector<1xf32>
    %42 = vector.shape_cast %41 : vector<1xf32> to vector<1x1xf32>
    %cst_25 = arith.constant 3.200000e+01 : f32
    %43 = vector.broadcast %cst_25 : f32 to vector<1x1xf32>
    %44 = arith.divf %42, %43 : vector<1x1xf32>
    %45 = vector.broadcast %37 : vector<1x1xf32> to vector<1x32xf32>
    %46 = arith.subf %31, %45 : vector<1x32xf32>
    %cst_26 = arith.constant 9.99999974E-6 : f32
    %47 = vector.broadcast %cst_26 : f32 to vector<1x1xf32>
    %48 = arith.addf %44, %47 : vector<1x1xf32>
    %49 = math.rsqrt %48 : vector<1x1xf32>
    %50 = vector.broadcast %49 : vector<1x1xf32> to vector<1x32xf32>
    %51 = arith.mulf %46, %50 : vector<1x32xf32>
    %52 = arith.mulf %51, %32 : vector<1x32xf32>
    %53 = arith.addf %52, %33 : vector<1x32xf32>
    %c0_27 = arith.constant 0 : index
    %c0_28 = arith.constant 0 : index
    %54 = vector.load %arg9[%c0_27, %c0_28] : memref<32x96xf32, #tpu.memory_space<vmem>>, vector<32x96xf32>
    %c0_29 = arith.constant 0 : index
    %c0_30 = arith.constant 0 : index
    %55 = vector.load %arg10[%c0_29, %c0_30] : memref<1x96xf32, #tpu.memory_space<vmem>>, vector<1x96xf32>
    %cst_31 = arith.constant dense<0.000000e+00> : vector<8x96xf32>
    %56 = tpu.matmul %25, %54, %cst_31 {dimension_numbers = #tpu.dot_dimension_numbers<[1], [0], [0], [1], [0, 0, 1, 1], [], []>} : vector<8x32xf32>, vector<32x96xf32>, vector<8x96xf32> -> vector<8x96xf32>
    %57 = vector.broadcast %55 : vector<1x96xf32> to vector<8x96xf32>
    %58 = arith.addf %56, %57 : vector<8x96xf32>
    %cst_32 = arith.constant dense<0.000000e+00> : vector<1x96xf32>
    %59 = tpu.matmul %53, %54, %cst_32 {dimension_numbers = #tpu.dot_dimension_numbers<[1], [0], [0], [1], [0, 0, 1, 1], [], []>} : vector<1x32xf32>, vector<32x96xf32>, vector<1x96xf32> -> vector<1x96xf32>
    %60 = arith.addf %59, %55 : vector<1x96xf32>
    %61 = vector.extract_strided_slice %58 {offsets = [0, 0], sizes = [8, 32], strides = [1, 1]} : vector<8x96xf32> to vector<8x32xf32>
    %cst_33 = arith.constant 0.353553385 : f32
    %62 = vector.broadcast %cst_33 : f32 to vector<8x32xf32>
    %63 = arith.mulf %61, %62 : vector<8x32xf32>
    %64 = vector.shape_cast %63 : vector<8x32xf32> to vector<1x8x32xf32>
    %65 = vector.extract_strided_slice %58 {offsets = [0, 32], sizes = [8, 32], strides = [1, 1]} : vector<8x96xf32> to vector<8x32xf32>
    %66 = vector.shape_cast %65 : vector<8x32xf32> to vector<1x8x32xf32>
    %67 = vector.extract_strided_slice %58 {offsets = [0, 64], sizes = [8, 32], strides = [1, 1]} : vector<8x96xf32> to vector<8x32xf32>
    %68 = vector.shape_cast %67 : vector<8x32xf32> to vector<1x8x32xf32>
    %69 = vector.extract_strided_slice %60 {offsets = [0, 32], sizes = [1, 32], strides = [1, 1]} : vector<1x96xf32> to vector<1x32xf32>
    %70 = vector.shape_cast %69 : vector<1x32xf32> to vector<1x1x32xf32>
    %71 = vector.extract_strided_slice %60 {offsets = [0, 64], sizes = [1, 32], strides = [1, 1]} : vector<1x96xf32> to vector<1x32xf32>
    %72 = vector.shape_cast %71 : vector<1x32xf32> to vector<1x1x32xf32>
    %73 = tpu.iota {dimensions = array<i32: 0>} : vector<8x8xi32>
    %74 = tpu.iota {dimensions = array<i32: 1>} : vector<8x8xi32>
    %75 = arith.cmpi sle, %74, %73 : vector<8x8xi32>
    %cst_34 = arith.constant 0.000000e+00 : f32
    %cst_35 = arith.constant -1.000000e+30 : f32
    %76 = vector.broadcast %cst_34 : f32 to vector<8x8xf32>
    %77 = vector.broadcast %cst_35 : f32 to vector<8x8xf32>
    %78 = arith.select %75, %76, %77 : vector<8x8xi1>, vector<8x8xf32>
    %79 = vector.shape_cast %78 : vector<8x8xf32> to vector<1x8x8xf32>
    %cst_36 = arith.constant 0.000000e+00 : f32
    %80 = vector.broadcast %cst_36 : f32 to vector<8x32xf32>
    %81 = vector.extract_strided_slice %64 {offsets = [0, 0, 0], sizes = [1, 8, 8], strides = [1, 1, 1]} : vector<1x8x32xf32> to vector<1x8x8xf32>
    %82 = vector.extract_strided_slice %66 {offsets = [0, 0, 0], sizes = [1, 8, 8], strides = [1, 1, 1]} : vector<1x8x32xf32> to vector<1x8x8xf32>
    %83 = vector.extract_strided_slice %68 {offsets = [0, 0, 0], sizes = [1, 8, 8], strides = [1, 1, 1]} : vector<1x8x32xf32> to vector<1x8x8xf32>
    %84 = vector.extract_strided_slice %70 {offsets = [0, 0, 0], sizes = [1, 1, 8], strides = [1, 1, 1]} : vector<1x1x32xf32> to vector<1x1x8xf32>
    %85 = vector.extract_strided_slice %72 {offsets = [0, 0, 0], sizes = [1, 1, 8], strides = [1, 1, 1]} : vector<1x1x32xf32> to vector<1x1x8xf32>
    "tpu.trace_start"() <{level = 10 : i32, message = "btd,bsd->bts"}> : () -> ()
    %cst_37 = arith.constant dense<0.000000e+00> : vector<1x8x8xf32>
    %86 = tpu.matmul %81, %82, %cst_37 {dimension_numbers = #tpu.dot_dimension_numbers<[2], [2], [1], [1], [0, 0, 0, 1, 1, 1], [0], [0]>} : vector<1x8x8xf32>, vector<1x8x8xf32>, vector<1x8x8xf32> -> vector<1x8x8xf32>
    "tpu.trace_stop"() : () -> ()
    %87 = arith.addf %86, %79 : vector<1x8x8xf32>
    %88 = vector.broadcast %84 : vector<1x1x8xf32> to vector<1x8x8xf32>
    %89 = arith.mulf %81, %88 : vector<1x8x8xf32>
    %cst_38 = arith.constant dense<0.000000e+00> : vector<1x8xf32>
    %90 = vector.multi_reduction <add>, %89, %cst_38 [2] : vector<1x8x8xf32> to vector<1x8xf32>
    %91 = vector.shape_cast %90 : vector<1x8xf32> to vector<1x8x1xf32>
    %cst_39 = arith.constant dense<0xFF800000> : vector<1x8xf32>
    %92 = vector.multi_reduction <maximumf>, %87, %cst_39 [2] : vector<1x8x8xf32> to vector<1x8xf32>
    %93 = vector.shape_cast %92 : vector<1x8xf32> to vector<1x8x1xf32>
    %94 = arith.maximumf %93, %91 : vector<1x8x1xf32>
    %95 = vector.broadcast %94 : vector<1x8x1xf32> to vector<1x8x8xf32>
    %96 = arith.subf %87, %95 : vector<1x8x8xf32>
    %97 = math.exp %96 : vector<1x8x8xf32>
    %98 = arith.subf %91, %94 : vector<1x8x1xf32>
    %99 = math.exp %98 : vector<1x8x1xf32>
    %cst_40 = arith.constant dense<0.000000e+00> : vector<1x8xf32>
    %100 = vector.multi_reduction <add>, %97, %cst_40 [2] : vector<1x8x8xf32> to vector<1x8xf32>
    %101 = vector.shape_cast %100 : vector<1x8xf32> to vector<1x8x1xf32>
    %102 = arith.addf %101, %99 : vector<1x8x1xf32>
    %103 = tpu.reciprocal %102 {approx = true} : vector<1x8x1xf32> -> vector<1x8x1xf32>
    %104 = arith.mulf %102, %103 : vector<1x8x1xf32>
    %cst_41 = arith.constant 2.000000e+00 : f32
    %105 = vector.broadcast %cst_41 : f32 to vector<1x8x1xf32>
    %106 = arith.subf %105, %104 : vector<1x8x1xf32>
    %107 = arith.mulf %103, %106 : vector<1x8x1xf32>
    "tpu.trace_start"() <{level = 10 : i32, message = "bts,bsd->btd"}> : () -> ()
    %cst_42 = arith.constant dense<0.000000e+00> : vector<1x8x8xf32>
    %108 = tpu.matmul %97, %83, %cst_42 {dimension_numbers = #tpu.dot_dimension_numbers<[2], [1], [1], [2], [0, 0, 0, 1, 1, 2], [0], [0]>} : vector<1x8x8xf32>, vector<1x8x8xf32>, vector<1x8x8xf32> -> vector<1x8x8xf32>
    "tpu.trace_stop"() : () -> ()
    %109 = vector.broadcast %99 : vector<1x8x1xf32> to vector<1x8x8xf32>
    %110 = vector.broadcast %85 : vector<1x1x8xf32> to vector<1x8x8xf32>
    %111 = arith.mulf %109, %110 : vector<1x8x8xf32>
    %112 = arith.addf %108, %111 : vector<1x8x8xf32>
    %113 = vector.broadcast %107 : vector<1x8x1xf32> to vector<1x8x8xf32>
    %114 = arith.mulf %112, %113 : vector<1x8x8xf32>
    %115 = vector.shape_cast %114 : vector<1x8x8xf32> to vector<8x8xf32>
    %c0_43 = arith.constant 0 : index
    %c0_44 = arith.constant 0 : index
    %116 = vector.load %arg11[%c0_43, %c0_44] : memref<32x32xf32, #tpu.memory_space<vmem>>, vector<8x32xf32>
    %cst_45 = arith.constant dense<0.000000e+00> : vector<8x32xf32>
    %117 = tpu.matmul %115, %116, %cst_45 {dimension_numbers = #tpu.dot_dimension_numbers<[1], [0], [0], [1], [0, 0, 1, 1], [], []>} : vector<8x8xf32>, vector<8x32xf32>, vector<8x32xf32> -> vector<8x32xf32>
    %118 = arith.addf %80, %117 : vector<8x32xf32>
    %119 = vector.extract_strided_slice %64 {offsets = [0, 0, 8], sizes = [1, 8, 8], strides = [1, 1, 1]} : vector<1x8x32xf32> to vector<1x8x8xf32>
    %120 = vector.extract_strided_slice %66 {offsets = [0, 0, 8], sizes = [1, 8, 8], strides = [1, 1, 1]} : vector<1x8x32xf32> to vector<1x8x8xf32>
    %121 = vector.extract_strided_slice %68 {offsets = [0, 0, 8], sizes = [1, 8, 8], strides = [1, 1, 1]} : vector<1x8x32xf32> to vector<1x8x8xf32>
    %122 = vector.extract_strided_slice %70 {offsets = [0, 0, 8], sizes = [1, 1, 8], strides = [1, 1, 1]} : vector<1x1x32xf32> to vector<1x1x8xf32>
    %123 = vector.extract_strided_slice %72 {offsets = [0, 0, 8], sizes = [1, 1, 8], strides = [1, 1, 1]} : vector<1x1x32xf32> to vector<1x1x8xf32>
    "tpu.trace_start"() <{level = 10 : i32, message = "btd,bsd->bts"}> : () -> ()
    %cst_46 = arith.constant dense<0.000000e+00> : vector<1x8x8xf32>
    %124 = tpu.matmul %119, %120, %cst_46 {dimension_numbers = #tpu.dot_dimension_numbers<[2], [2], [1], [1], [0, 0, 0, 1, 1, 1], [0], [0]>} : vector<1x8x8xf32>, vector<1x8x8xf32>, vector<1x8x8xf32> -> vector<1x8x8xf32>
    "tpu.trace_stop"() : () -> ()
    %125 = arith.addf %124, %79 : vector<1x8x8xf32>
    %126 = vector.broadcast %122 : vector<1x1x8xf32> to vector<1x8x8xf32>
    %127 = arith.mulf %119, %126 : vector<1x8x8xf32>
    %cst_47 = arith.constant dense<0.000000e+00> : vector<1x8xf32>
    %128 = vector.multi_reduction <add>, %127, %cst_47 [2] : vector<1x8x8xf32> to vector<1x8xf32>
    %129 = vector.shape_cast %128 : vector<1x8xf32> to vector<1x8x1xf32>
    %cst_48 = arith.constant dense<0xFF800000> : vector<1x8xf32>
    %130 = vector.multi_reduction <maximumf>, %125, %cst_48 [2] : vector<1x8x8xf32> to vector<1x8xf32>
    %131 = vector.shape_cast %130 : vector<1x8xf32> to vector<1x8x1xf32>
    %132 = arith.maximumf %131, %129 : vector<1x8x1xf32>
    %133 = vector.broadcast %132 : vector<1x8x1xf32> to vector<1x8x8xf32>
    %134 = arith.subf %125, %133 : vector<1x8x8xf32>
    %135 = math.exp %134 : vector<1x8x8xf32>
    %136 = arith.subf %129, %132 : vector<1x8x1xf32>
    %137 = math.exp %136 : vector<1x8x1xf32>
    %cst_49 = arith.constant dense<0.000000e+00> : vector<1x8xf32>
    %138 = vector.multi_reduction <add>, %135, %cst_49 [2] : vector<1x8x8xf32> to vector<1x8xf32>
    %139 = vector.shape_cast %138 : vector<1x8xf32> to vector<1x8x1xf32>
    %140 = arith.addf %139, %137 : vector<1x8x1xf32>
    %141 = tpu.reciprocal %140 {approx = true} : vector<1x8x1xf32> -> vector<1x8x1xf32>
    %142 = arith.mulf %140, %141 : vector<1x8x1xf32>
    %cst_50 = arith.constant 2.000000e+00 : f32
    %143 = vector.broadcast %cst_50 : f32 to vector<1x8x1xf32>
    %144 = arith.subf %143, %142 : vector<1x8x1xf32>
    %145 = arith.mulf %141, %144 : vector<1x8x1xf32>
    "tpu.trace_start"() <{level = 10 : i32, message = "bts,bsd->btd"}> : () -> ()
    %cst_51 = arith.constant dense<0.000000e+00> : vector<1x8x8xf32>
    %146 = tpu.matmul %135, %121, %cst_51 {dimension_numbers = #tpu.dot_dimension_numbers<[2], [1], [1], [2], [0, 0, 0, 1, 1, 2], [0], [0]>} : vector<1x8x8xf32>, vector<1x8x8xf32>, vector<1x8x8xf32> -> vector<1x8x8xf32>
    "tpu.trace_stop"() : () -> ()
    %147 = vector.broadcast %137 : vector<1x8x1xf32> to vector<1x8x8xf32>
    %148 = vector.broadcast %123 : vector<1x1x8xf32> to vector<1x8x8xf32>
    %149 = arith.mulf %147, %148 : vector<1x8x8xf32>
    %150 = arith.addf %146, %149 : vector<1x8x8xf32>
    %151 = vector.broadcast %145 : vector<1x8x1xf32> to vector<1x8x8xf32>
    %152 = arith.mulf %150, %151 : vector<1x8x8xf32>
    %153 = vector.shape_cast %152 : vector<1x8x8xf32> to vector<8x8xf32>
    %c8 = arith.constant 8 : index
    %c0_52 = arith.constant 0 : index
    %154 = vector.load %arg11[%c8, %c0_52] : memref<32x32xf32, #tpu.memory_space<vmem>>, vector<8x32xf32>
    %cst_53 = arith.constant dense<0.000000e+00> : vector<8x32xf32>
    %155 = tpu.matmul %153, %154, %cst_53 {dimension_numbers = #tpu.dot_dimension_numbers<[1], [0], [0], [1], [0, 0, 1, 1], [], []>} : vector<8x8xf32>, vector<8x32xf32>, vector<8x32xf32> -> vector<8x32xf32>
    %156 = arith.addf %118, %155 : vector<8x32xf32>
    %157 = vector.extract_strided_slice %64 {offsets = [0, 0, 16], sizes = [1, 8, 8], strides = [1, 1, 1]} : vector<1x8x32xf32> to vector<1x8x8xf32>
    %158 = vector.extract_strided_slice %66 {offsets = [0, 0, 16], sizes = [1, 8, 8], strides = [1, 1, 1]} : vector<1x8x32xf32> to vector<1x8x8xf32>
    %159 = vector.extract_strided_slice %68 {offsets = [0, 0, 16], sizes = [1, 8, 8], strides = [1, 1, 1]} : vector<1x8x32xf32> to vector<1x8x8xf32>
    %160 = vector.extract_strided_slice %70 {offsets = [0, 0, 16], sizes = [1, 1, 8], strides = [1, 1, 1]} : vector<1x1x32xf32> to vector<1x1x8xf32>
    %161 = vector.extract_strided_slice %72 {offsets = [0, 0, 16], sizes = [1, 1, 8], strides = [1, 1, 1]} : vector<1x1x32xf32> to vector<1x1x8xf32>
    "tpu.trace_start"() <{level = 10 : i32, message = "btd,bsd->bts"}> : () -> ()
    %cst_54 = arith.constant dense<0.000000e+00> : vector<1x8x8xf32>
    %162 = tpu.matmul %157, %158, %cst_54 {dimension_numbers = #tpu.dot_dimension_numbers<[2], [2], [1], [1], [0, 0, 0, 1, 1, 1], [0], [0]>} : vector<1x8x8xf32>, vector<1x8x8xf32>, vector<1x8x8xf32> -> vector<1x8x8xf32>
    "tpu.trace_stop"() : () -> ()
    %163 = arith.addf %162, %79 : vector<1x8x8xf32>
    %164 = vector.broadcast %160 : vector<1x1x8xf32> to vector<1x8x8xf32>
    %165 = arith.mulf %157, %164 : vector<1x8x8xf32>
    %cst_55 = arith.constant dense<0.000000e+00> : vector<1x8xf32>
    %166 = vector.multi_reduction <add>, %165, %cst_55 [2] : vector<1x8x8xf32> to vector<1x8xf32>
    %167 = vector.shape_cast %166 : vector<1x8xf32> to vector<1x8x1xf32>
    %cst_56 = arith.constant dense<0xFF800000> : vector<1x8xf32>
    %168 = vector.multi_reduction <maximumf>, %163, %cst_56 [2] : vector<1x8x8xf32> to vector<1x8xf32>
    %169 = vector.shape_cast %168 : vector<1x8xf32> to vector<1x8x1xf32>
    %170 = arith.maximumf %169, %167 : vector<1x8x1xf32>
    %171 = vector.broadcast %170 : vector<1x8x1xf32> to vector<1x8x8xf32>
    %172 = arith.subf %163, %171 : vector<1x8x8xf32>
    %173 = math.exp %172 : vector<1x8x8xf32>
    %174 = arith.subf %167, %170 : vector<1x8x1xf32>
    %175 = math.exp %174 : vector<1x8x1xf32>
    %cst_57 = arith.constant dense<0.000000e+00> : vector<1x8xf32>
    %176 = vector.multi_reduction <add>, %173, %cst_57 [2] : vector<1x8x8xf32> to vector<1x8xf32>
    %177 = vector.shape_cast %176 : vector<1x8xf32> to vector<1x8x1xf32>
    %178 = arith.addf %177, %175 : vector<1x8x1xf32>
    %179 = tpu.reciprocal %178 {approx = true} : vector<1x8x1xf32> -> vector<1x8x1xf32>
    %180 = arith.mulf %178, %179 : vector<1x8x1xf32>
    %cst_58 = arith.constant 2.000000e+00 : f32
    %181 = vector.broadcast %cst_58 : f32 to vector<1x8x1xf32>
    %182 = arith.subf %181, %180 : vector<1x8x1xf32>
    %183 = arith.mulf %179, %182 : vector<1x8x1xf32>
    "tpu.trace_start"() <{level = 10 : i32, message = "bts,bsd->btd"}> : () -> ()
    %cst_59 = arith.constant dense<0.000000e+00> : vector<1x8x8xf32>
    %184 = tpu.matmul %173, %159, %cst_59 {dimension_numbers = #tpu.dot_dimension_numbers<[2], [1], [1], [2], [0, 0, 0, 1, 1, 2], [0], [0]>} : vector<1x8x8xf32>, vector<1x8x8xf32>, vector<1x8x8xf32> -> vector<1x8x8xf32>
    "tpu.trace_stop"() : () -> ()
    %185 = vector.broadcast %175 : vector<1x8x1xf32> to vector<1x8x8xf32>
    %186 = vector.broadcast %161 : vector<1x1x8xf32> to vector<1x8x8xf32>
    %187 = arith.mulf %185, %186 : vector<1x8x8xf32>
    %188 = arith.addf %184, %187 : vector<1x8x8xf32>
    %189 = vector.broadcast %183 : vector<1x8x1xf32> to vector<1x8x8xf32>
    %190 = arith.mulf %188, %189 : vector<1x8x8xf32>
    %191 = vector.shape_cast %190 : vector<1x8x8xf32> to vector<8x8xf32>
    %c16 = arith.constant 16 : index
    %c0_60 = arith.constant 0 : index
    %192 = vector.load %arg11[%c16, %c0_60] : memref<32x32xf32, #tpu.memory_space<vmem>>, vector<8x32xf32>
    %cst_61 = arith.constant dense<0.000000e+00> : vector<8x32xf32>
    %193 = tpu.matmul %191, %192, %cst_61 {dimension_numbers = #tpu.dot_dimension_numbers<[1], [0], [0], [1], [0, 0, 1, 1], [], []>} : vector<8x8xf32>, vector<8x32xf32>, vector<8x32xf32> -> vector<8x32xf32>
    %194 = arith.addf %156, %193 : vector<8x32xf32>
    %195 = vector.extract_strided_slice %64 {offsets = [0, 0, 24], sizes = [1, 8, 8], strides = [1, 1, 1]} : vector<1x8x32xf32> to vector<1x8x8xf32>
    %196 = vector.extract_strided_slice %66 {offsets = [0, 0, 24], sizes = [1, 8, 8], strides = [1, 1, 1]} : vector<1x8x32xf32> to vector<1x8x8xf32>
    %197 = vector.extract_strided_slice %68 {offsets = [0, 0, 24], sizes = [1, 8, 8], strides = [1, 1, 1]} : vector<1x8x32xf32> to vector<1x8x8xf32>
    %198 = vector.extract_strided_slice %70 {offsets = [0, 0, 24], sizes = [1, 1, 8], strides = [1, 1, 1]} : vector<1x1x32xf32> to vector<1x1x8xf32>
    %199 = vector.extract_strided_slice %72 {offsets = [0, 0, 24], sizes = [1, 1, 8], strides = [1, 1, 1]} : vector<1x1x32xf32> to vector<1x1x8xf32>
    "tpu.trace_start"() <{level = 10 : i32, message = "btd,bsd->bts"}> : () -> ()
    %cst_62 = arith.constant dense<0.000000e+00> : vector<1x8x8xf32>
    %200 = tpu.matmul %195, %196, %cst_62 {dimension_numbers = #tpu.dot_dimension_numbers<[2], [2], [1], [1], [0, 0, 0, 1, 1, 1], [0], [0]>} : vector<1x8x8xf32>, vector<1x8x8xf32>, vector<1x8x8xf32> -> vector<1x8x8xf32>
    "tpu.trace_stop"() : () -> ()
    %201 = arith.addf %200, %79 : vector<1x8x8xf32>
    %202 = vector.broadcast %198 : vector<1x1x8xf32> to vector<1x8x8xf32>
    %203 = arith.mulf %195, %202 : vector<1x8x8xf32>
    %cst_63 = arith.constant dense<0.000000e+00> : vector<1x8xf32>
    %204 = vector.multi_reduction <add>, %203, %cst_63 [2] : vector<1x8x8xf32> to vector<1x8xf32>
    %205 = vector.shape_cast %204 : vector<1x8xf32> to vector<1x8x1xf32>
    %cst_64 = arith.constant dense<0xFF800000> : vector<1x8xf32>
    %206 = vector.multi_reduction <maximumf>, %201, %cst_64 [2] : vector<1x8x8xf32> to vector<1x8xf32>
    %207 = vector.shape_cast %206 : vector<1x8xf32> to vector<1x8x1xf32>
    %208 = arith.maximumf %207, %205 : vector<1x8x1xf32>
    %209 = vector.broadcast %208 : vector<1x8x1xf32> to vector<1x8x8xf32>
    %210 = arith.subf %201, %209 : vector<1x8x8xf32>
    %211 = math.exp %210 : vector<1x8x8xf32>
    %212 = arith.subf %205, %208 : vector<1x8x1xf32>
    %213 = math.exp %212 : vector<1x8x1xf32>
    %cst_65 = arith.constant dense<0.000000e+00> : vector<1x8xf32>
    %214 = vector.multi_reduction <add>, %211, %cst_65 [2] : vector<1x8x8xf32> to vector<1x8xf32>
    %215 = vector.shape_cast %214 : vector<1x8xf32> to vector<1x8x1xf32>
    %216 = arith.addf %215, %213 : vector<1x8x1xf32>
    %217 = tpu.reciprocal %216 {approx = true} : vector<1x8x1xf32> -> vector<1x8x1xf32>
    %218 = arith.mulf %216, %217 : vector<1x8x1xf32>
    %cst_66 = arith.constant 2.000000e+00 : f32
    %219 = vector.broadcast %cst_66 : f32 to vector<1x8x1xf32>
    %220 = arith.subf %219, %218 : vector<1x8x1xf32>
    %221 = arith.mulf %217, %220 : vector<1x8x1xf32>
    "tpu.trace_start"() <{level = 10 : i32, message = "bts,bsd->btd"}> : () -> ()
    %cst_67 = arith.constant dense<0.000000e+00> : vector<1x8x8xf32>
    %222 = tpu.matmul %211, %197, %cst_67 {dimension_numbers = #tpu.dot_dimension_numbers<[2], [1], [1], [2], [0, 0, 0, 1, 1, 2], [0], [0]>} : vector<1x8x8xf32>, vector<1x8x8xf32>, vector<1x8x8xf32> -> vector<1x8x8xf32>
    "tpu.trace_stop"() : () -> ()
    %223 = vector.broadcast %213 : vector<1x8x1xf32> to vector<1x8x8xf32>
    %224 = vector.broadcast %199 : vector<1x1x8xf32> to vector<1x8x8xf32>
    %225 = arith.mulf %223, %224 : vector<1x8x8xf32>
    %226 = arith.addf %222, %225 : vector<1x8x8xf32>
    %227 = vector.broadcast %221 : vector<1x8x1xf32> to vector<1x8x8xf32>
    %228 = arith.mulf %226, %227 : vector<1x8x8xf32>
    %229 = vector.shape_cast %228 : vector<1x8x8xf32> to vector<8x8xf32>
    %c24 = arith.constant 24 : index
    %c0_68 = arith.constant 0 : index
    %230 = vector.load %arg11[%c24, %c0_68] : memref<32x32xf32, #tpu.memory_space<vmem>>, vector<8x32xf32>
    %cst_69 = arith.constant dense<0.000000e+00> : vector<8x32xf32>
    %231 = tpu.matmul %229, %230, %cst_69 {dimension_numbers = #tpu.dot_dimension_numbers<[1], [0], [0], [1], [0, 0, 1, 1], [], []>} : vector<8x8xf32>, vector<8x32xf32>, vector<8x32xf32> -> vector<8x32xf32>
    %232 = arith.addf %194, %231 : vector<8x32xf32>
    %c0_70 = arith.constant 0 : index
    %c0_71 = arith.constant 0 : index
    %233 = vector.load %arg12[%c0_70, %c0_71] : memref<1x32xf32, #tpu.memory_space<vmem>>, vector<1x32xf32>
    %234 = vector.broadcast %233 : vector<1x32xf32> to vector<8x32xf32>
    %235 = arith.addf %232, %234 : vector<8x32xf32>
    %236 = arith.addf %235, %1 : vector<8x32xf32>
    %c0_72 = arith.constant 0 : index
    %c0_73 = arith.constant 0 : index
    %237 = vector.load %arg13[%c0_72, %c0_73] : memref<1x32xf32, #tpu.memory_space<vmem>>, vector<1x32xf32>
    %c0_74 = arith.constant 0 : index
    %c0_75 = arith.constant 0 : index
    %238 = vector.load %arg14[%c0_74, %c0_75] : memref<1x32xf32, #tpu.memory_space<vmem>>, vector<1x32xf32>
    %cst_76 = arith.constant dense<0.000000e+00> : vector<8xf32>
    %239 = vector.multi_reduction <add>, %236, %cst_76 [1] : vector<8x32xf32> to vector<8xf32>
    %240 = vector.shape_cast %239 : vector<8xf32> to vector<8x1xf32>
    %cst_77 = arith.constant 3.200000e+01 : f32
    %241 = vector.broadcast %cst_77 : f32 to vector<8x1xf32>
    %242 = arith.divf %240, %241 : vector<8x1xf32>
    %243 = vector.broadcast %242 : vector<8x1xf32> to vector<8x32xf32>
    %244 = arith.subf %236, %243 : vector<8x32xf32>
    %245 = arith.mulf %244, %244 : vector<8x32xf32>
    %cst_78 = arith.constant dense<0.000000e+00> : vector<8xf32>
    %246 = vector.multi_reduction <add>, %245, %cst_78 [1] : vector<8x32xf32> to vector<8xf32>
    %247 = vector.shape_cast %246 : vector<8xf32> to vector<8x1xf32>
    %cst_79 = arith.constant 3.200000e+01 : f32
    %248 = vector.broadcast %cst_79 : f32 to vector<8x1xf32>
    %249 = arith.divf %247, %248 : vector<8x1xf32>
    %250 = vector.broadcast %242 : vector<8x1xf32> to vector<8x32xf32>
    %251 = arith.subf %236, %250 : vector<8x32xf32>
    %cst_80 = arith.constant 9.99999974E-6 : f32
    %252 = vector.broadcast %cst_80 : f32 to vector<8x1xf32>
    %253 = arith.addf %249, %252 : vector<8x1xf32>
    %254 = math.rsqrt %253 : vector<8x1xf32>
    %255 = vector.broadcast %254 : vector<8x1xf32> to vector<8x32xf32>
    %256 = arith.mulf %251, %255 : vector<8x32xf32>
    %257 = vector.broadcast %237 : vector<1x32xf32> to vector<8x32xf32>
    %258 = arith.mulf %256, %257 : vector<8x32xf32>
    %259 = vector.broadcast %238 : vector<1x32xf32> to vector<8x32xf32>
    %260 = arith.addf %258, %259 : vector<8x32xf32>
    %cst_81 = arith.constant 0.000000e+00 : f32
    %261 = vector.broadcast %cst_81 : f32 to vector<8x32xf32>
    %c0_82 = arith.constant 0 : index
    %c0_83 = arith.constant 0 : index
    %262 = vector.load %arg15[%c0_82, %c0_83] : memref<32x128xf32, #tpu.memory_space<vmem>>, vector<32x128xf32>
    %cst_84 = arith.constant dense<0.000000e+00> : vector<8x128xf32>
    %263 = tpu.matmul %260, %262, %cst_84 {dimension_numbers = #tpu.dot_dimension_numbers<[1], [0], [0], [1], [0, 0, 1, 1], [], []>} : vector<8x32xf32>, vector<32x128xf32>, vector<8x128xf32> -> vector<8x128xf32>
    %c0_85 = arith.constant 0 : index
    %c0_86 = arith.constant 0 : index
    %264 = vector.load %arg16[%c0_85, %c0_86] : memref<1x128xf32, #tpu.memory_space<vmem>>, vector<1x128xf32>
    %265 = vector.broadcast %264 : vector<1x128xf32> to vector<8x128xf32>
    %266 = arith.addf %263, %265 : vector<8x128xf32>
    %cst_87 = arith.constant 5.000000e-01 : f32
    %267 = vector.broadcast %cst_87 : f32 to vector<8x128xf32>
    %268 = arith.mulf %267, %266 : vector<8x128xf32>
    %cst_88 = arith.constant 0.636619746 : f32
    %269 = math.sqrt %cst_88 : f32
    %270 = arith.mulf %266, %266 : vector<8x128xf32>
    %271 = arith.mulf %266, %270 : vector<8x128xf32>
    %cst_89 = arith.constant 4.471500e-02 : f32
    %272 = vector.broadcast %cst_89 : f32 to vector<8x128xf32>
    %273 = arith.mulf %272, %271 : vector<8x128xf32>
    %274 = arith.addf %266, %273 : vector<8x128xf32>
    %275 = vector.broadcast %269 : f32 to vector<8x128xf32>
    %276 = arith.mulf %275, %274 : vector<8x128xf32>
    %277 = math.tanh %276 : vector<8x128xf32>
    %cst_90 = arith.constant 1.000000e+00 : f32
    %278 = vector.broadcast %cst_90 : f32 to vector<8x128xf32>
    %279 = arith.addf %278, %277 : vector<8x128xf32>
    %280 = arith.mulf %268, %279 : vector<8x128xf32>
    %c0_91 = arith.constant 0 : index
    %c0_92 = arith.constant 0 : index
    %281 = vector.load %arg17[%c0_91, %c0_92] : memref<128x32xf32, #tpu.memory_space<vmem>>, vector<128x32xf32>
    %cst_93 = arith.constant dense<0.000000e+00> : vector<8x32xf32>
    %282 = tpu.matmul %280, %281, %cst_93 {dimension_numbers = #tpu.dot_dimension_numbers<[1], [0], [0], [1], [0, 0, 1, 1], [], []>} : vector<8x128xf32>, vector<128x32xf32>, vector<8x32xf32> -> vector<8x32xf32>
    %283 = arith.addf %261, %282 : vector<8x32xf32>
    %c0_94 = arith.constant 0 : index
    %c0_95 = arith.constant 0 : index
    %284 = vector.load %arg18[%c0_94, %c0_95] : memref<1x32xf32, #tpu.memory_space<vmem>>, vector<1x32xf32>
    %285 = vector.broadcast %284 : vector<1x32xf32> to vector<8x32xf32>
    %286 = arith.addf %283, %285 : vector<8x32xf32>
    %287 = arith.addf %236, %286 : vector<8x32xf32>
    %288 = vector.shape_cast %287 : vector<8x32xf32> to vector<1x8x32xf32>
    %c0_96 = arith.constant 0 : index
    %c0_97 = arith.constant 0 : index
    %c0_98 = arith.constant 0 : index
    %289 = vector.load %arg19[%c0_96, %c0_97, %c0_98] : memref<1x8x32xf32, #tpu.memory_space<vmem>>, vector<1x8x32xf32>
    tpu.vector_store %arg19[%c0_96, %c0_97, %c0_98], %288 {strides = array<i32>} : memref<1x8x32xf32, #tpu.memory_space<vmem>>, vector<1x8x32xf32>,
    return
  }
  func.func @transform_0(%arg0: i32) -> (i32, i32, i32) {
    %c0_i32 = arith.constant 0 : i32
    %c0_i32_0 = arith.constant 0 : i32
    %c0_i32_1 = arith.constant 0 : i32
    return %arg0, %c0_i32, %c0_i32_0 : i32, i32, i32
  }
  func.func @transform_1(%arg0: i32) -> (i32, i32, i32) {
    %c0_i32 = arith.constant 0 : i32
    %c0_i32_0 = arith.constant 0 : i32
    %c0_i32_1 = arith.constant 0 : i32
    return %arg0, %c0_i32, %c0_i32_0 : i32, i32, i32
  }
  func.func @transform_2(%arg0: i32) -> (i32, i32) {
    %c0_i32 = arith.constant 0 : i32
    %c0_i32_0 = arith.constant 0 : i32
    %c0_i32_1 = arith.constant 0 : i32
    return %c0_i32, %c0_i32_0 : i32, i32
  }
  func.func @transform_3(%arg0: i32) -> (i32, i32) {
    %c0_i32 = arith.constant 0 : i32
    %c0_i32_0 = arith.constant 0 : i32
    %c0_i32_1 = arith.constant 0 : i32
    return %c0_i32, %c0_i32_0 : i32, i32
  }
  func.func @transform_4(%arg0: i32) -> (i32, i32) {
    %c0_i32 = arith.constant 0 : i32
    %c0_i32_0 = arith.constant 0 : i32
    %c0_i32_1 = arith.constant 0 : i32
    return %c0_i32, %c0_i32_0 : i32, i32
  }
  func.func @transform_5(%arg0: i32) -> (i32, i32) {
    %c0_i32 = arith.constant 0 : i32
    %c0_i32_0 = arith.constant 0 : i32
    %c0_i32_1 = arith.constant 0 : i32
    return %c0_i32, %c0_i32_0 : i32, i32
  }
  func.func @transform_6(%arg0: i32) -> (i32, i32) {
    %c0_i32 = arith.constant 0 : i32
    %c0_i32_0 = arith.constant 0 : i32
    %c0_i32_1 = arith.constant 0 : i32
    return %c0_i32, %c0_i32_0 : i32, i32
  }
  func.func @transform_7(%arg0: i32) -> (i32, i32) {
    %c0_i32 = arith.constant 0 : i32
    %c0_i32_0 = arith.constant 0 : i32
    %c0_i32_1 = arith.constant 0 : i32
    return %c0_i32, %c0_i32_0 : i32, i32
  }
  func.func @transform_8(%arg0: i32) -> (i32, i32) {
    %c0_i32 = arith.constant 0 : i32
    %c0_i32_0 = arith.constant 0 : i32
    %c0_i32_1 = arith.constant 0 : i32
    return %c0_i32, %c0_i32_0 : i32, i32
  }
  func.func @transform_9(%arg0: i32) -> (i32, i32) {
    %c0_i32 = arith.constant 0 : i32
    %c0_i32_0 = arith.constant 0 : i32
    %c0_i32_1 = arith.constant 0 : i32
    return %c0_i32, %c0_i32_0 : i32, i32
  }
  func.func @transform_10(%arg0: i32) -> (i32, i32) {
    %c0_i32 = arith.constant 0 : i32
    %c0_i32_0 = arith.constant 0 : i32
    %c0_i32_1 = arith.constant 0 : i32
    return %c0_i32, %c0_i32_0 : i32, i32
  }
  func.func @transform_11(%arg0: i32) -> (i32, i32) {
    %c0_i32 = arith.constant 0 : i32
    %c0_i32_0 = arith.constant 0 : i32
    %c0_i32_1 = arith.constant 0 : i32
    return %c0_i32, %c0_i32_0 : i32, i32
  }
  func.func @transform_12(%arg0: i32) -> (i32, i32) {
    %c0_i32 = arith.constant 0 : i32
    %c0_i32_0 = arith.constant 0 : i32
    %c0_i32_1 = arith.constant 0 : i32
    return %c0_i32, %c0_i32_0 : i32, i32
  }
  func.func @transform_13(%arg0: i32) -> (i32, i32) {
    %c0_i32 = arith.constant 0 : i32
    %c0_i32_0 = arith.constant 0 : i32
    %c0_i32_1 = arith.constant 0 : i32
    return %c0_i32, %c0_i32_0 : i32, i32
  }
  func.func @transform_14(%arg0: i32) -> (i32, i32) {
    %c0_i32 = arith.constant 0 : i32
    %c0_i32_0 = arith.constant 0 : i32
    %c0_i32_1 = arith.constant 0 : i32
    return %c0_i32, %c0_i32_0 : i32, i32
  }
  func.func @transform_15(%arg0: i32) -> (i32, i32) {
    %c0_i32 = arith.constant 0 : i32
    %c0_i32_0 = arith.constant 0 : i32
    %c0_i32_1 = arith.constant 0 : i32
    return %c0_i32, %c0_i32_0 : i32, i32
  }
  func.func @transform_16(%arg0: i32) -> (i32, i32) {
    %c0_i32 = arith.constant 0 : i32
    %c0_i32_0 = arith.constant 0 : i32
    %c0_i32_1 = arith.constant 0 : i32
    return %c0_i32, %c0_i32_0 : i32, i32
  }
  func.func @transform_17(%arg0: i32) -> (i32, i32) {
    %c0_i32 = arith.constant 0 : i32
    %c0_i32_0 = arith.constant 0 : i32
    %c0_i32_1 = arith.constant 0 : i32
    return %c0_i32, %c0_i32_0 : i32, i32
  }
  func.func @transform_18(%arg0: i32) -> (i32, i32, i32) {
    %c0_i32 = arith.constant 0 : i32
    %c0_i32_0 = arith.constant 0 : i32
    %c0_i32_1 = arith.constant 0 : i32
    return %arg0, %c0_i32, %c0_i32_0 : i32, i32, i32
  }
}

</mosaic_0001>

<llo_original>
// kernel: tpu_custom_call.1
$region0: #{tpu_custom_call.1}
  #allocation0 [shape = 'u32[]', space=smem, size = 0x4, offset = 0x4, fixed_abs, tag = 'smem constant byte address 0x4 - core index']
  #allocation1 [shape = 'u32[144,128]{1,0:T(1,128)}', space=vmem, size = 0x12000, scoped, tag = 'internal scratch']
  %s0 = inlined_call_operand.vmem [shape: f32[2,8,32], index: 0, kind: input, shape index: {}]
  %s1 = inlined_call_operand.vmem [shape: f32[2,1,16], index: 1, kind: input, shape index: {}]
  %s2 = inlined_call_operand.vmem [shape: f32[16,32], index: 2, kind: input, shape index: {}]
  %s3 = inlined_call_operand.vmem [shape: f32[1,32], index: 3, kind: input, shape index: {}]
  %s4 = inlined_call_operand.vmem [shape: f32[1,32], index: 4, kind: input, shape index: {}]
  %s5 = inlined_call_operand.vmem [shape: f32[1,32], index: 5, kind: input, shape index: {}]
  %s6 = inlined_call_operand.vmem [shape: f32[1,32], index: 6, kind: input, shape index: {}]
  %s7 = inlined_call_operand.vmem [shape: f32[1,32], index: 7, kind: input, shape index: {}]
  %s8 = inlined_call_operand.vmem [shape: f32[32,96], index: 8, kind: input, shape index: {}]
  %s9 = inlined_call_operand.vmem [shape: f32[1,96], index: 9, kind: input, shape index: {}]
  %s10 = inlined_call_operand.vmem [shape: f32[32,32], index: 10, kind: input, shape index: {}]
  %s11 = inlined_call_operand.vmem [shape: f32[1,32], index: 11, kind: input, shape index: {}]
  %s12 = inlined_call_operand.vmem [shape: f32[1,32], index: 12, kind: input, shape index: {}]
  %s13 = inlined_call_operand.vmem [shape: f32[1,32], index: 13, kind: input, shape index: {}]
  %s14 = inlined_call_operand.vmem [shape: f32[32,128], index: 14, kind: input, shape index: {}]
  %s15 = inlined_call_operand.vmem [shape: f32[1,128], index: 15, kind: input, shape index: {}]
  %s16 = inlined_call_operand.vmem [shape: f32[128,32], index: 16, kind: input, shape index: {}]
  %s17 = inlined_call_operand.vmem [shape: f32[1,32], index: 17, kind: input, shape index: {}]
  %s18 = inlined_call_operand.hbm [shape: f32[2,8,32], index: 18, kind: output, shape index: {}]
  %s19 = sld [smem:[#allocation0]]
  $region105: #{tpu_custom_call.1} parent=0
    _
  %s21 = ssub.s32 1, %s19
  %s22 = scalar_select 0, %s21, %s19
  $region1: #{tpu_custom_call.1} parent=0
    #allocation2 [shape = 'u8[8192]{0}', space=vmem, size = 0x2000, scoped, tag = 'output window, operand 0']
    #allocation3 [shape = 's32[2]{0}', space=sflag, size = 0x8, scoped, tag = 'scoped memory for tpu_custom_call.1']
    %23 = vsyncpa [#allocation3], 0
    %s24 = scalar_lea.sflag [#allocation3], 1
    %25 = vsyncpa %s24, 0
    loop: start=0, step=1, limit=4
    $region2: #{tpu_custom_call.1} parent=1 // loop_pre_header
      _
    $region3: #{tpu_custom_call.1} parent=1 // loop_header
      %s27 = sphi 0, %s31
      %p28 = scmp.ge.s32.totalorder %s27, 4
      %s37 = sphi 0, %s39
      %s40 = sphi 0, %s37
      %s41 = sphi 0, %s40
      %s57 = sphi 0, %s41
      %s63 = sphi 0, %s65
      %s66 = sphi 0, %s63
      %s67 = sphi 0, %s66
      %s83 = sphi 0, %s67
      %s87 = sphi 0, %s87
      %s89 = sphi 0, %s87
      %s90 = sphi 0, %s89
      %s104 = sphi 0, %s90
      %s108 = sphi 0, %s108
      %s110 = sphi 0, %s108
      %s111 = sphi 0, %s110
      %s125 = sphi 0, %s111
      %s129 = sphi 0, %s129
      %s131 = sphi 0, %s129
      %s132 = sphi 0, %s131
      %s146 = sphi 0, %s132
      %s150 = sphi 0, %s150
      %s152 = sphi 0, %s150
      %s153 = sphi 0, %s152
      %s167 = sphi 0, %s153
      %s171 = sphi 0, %s171
      %s173 = sphi 0, %s171
      %s174 = sphi 0, %s173
      %s188 = sphi 0, %s174
      %s192 = sphi 0, %s192
      %s194 = sphi 0, %s192
      %s195 = sphi 0, %s194
      %s209 = sphi 0, %s195
      %s213 = sphi 0, %s213
      %s215 = sphi 0, %s213
      %s216 = sphi 0, %s215
      %s230 = sphi 0, %s216
      %s234 = sphi 0, %s234
      %s236 = sphi 0, %s234
      %s237 = sphi 0, %s236
      %s251 = sphi 0, %s237
      %s255 = sphi 0, %s255
      %s257 = sphi 0, %s255
      %s258 = sphi 0, %s257
      %s272 = sphi 0, %s258
      %s276 = sphi 0, %s276
      %s278 = sphi 0, %s276
      %s279 = sphi 0, %s278
      %s293 = sphi 0, %s279
      %s297 = sphi 0, %s297
      %s299 = sphi 0, %s297
      %s300 = sphi 0, %s299
      %s314 = sphi 0, %s300
      %s318 = sphi 0, %s318
      %s320 = sphi 0, %s318
      %s321 = sphi 0, %s320
      %s335 = sphi 0, %s321
      %s339 = sphi 0, %s339
      %s341 = sphi 0, %s339
      %s342 = sphi 0, %s341
      %s356 = sphi 0, %s342
      %s360 = sphi 0, %s360
      %s362 = sphi 0, %s360
      %s363 = sphi 0, %s362
      %s377 = sphi 0, %s363
      %s381 = sphi 0, %s381
      %s383 = sphi 0, %s381
      %s384 = sphi 0, %s383
      %s398 = sphi 0, %s384
      %s402 = sphi 0, %s402
      %s404 = sphi 0, %s402
      %s405 = sphi 0, %s404
      %s419 = sphi 0, %s405
      %s425 = sphi 0, %s427
      %s428 = sphi 0, %s425
      %s429 = sphi 0, %s428
      %s445 = sphi 0, %s429
    $region4: #{tpu_custom_call.1} parent=1 // loop_header_branch
      %30 = sbr.rel (%p28) target = $region8
    $region5: #{tpu_custom_call.1} parent=1 // loop_body
      %s32 = ssub.s32 %s27, 1
      %s33 = ssub.s32 %s27, 2
      %s34 = sadd.s32 %s27, 1
      %s35 = ssub.s32 %s27, %s34
      %p36 = scmp.eq.s32.totalorder %s35, 0
      %s38 = sadd.s32 %s37, 1
      %s39 = scalar_select %p36, %s37, %s38
      %p42 = pneg %p36
      %p43 = scmp.eq.s32.totalorder %s27, 1
      %p44 = por %p42, %p43
      %p45 = scmp.ne.s32.totalorder %s37, %s40
      %p46 = scmp.eq.s32.totalorder %s27, 0
      %p47 = por %p45, %p46
      %p48 = scmp.ne.s32.totalorder %s37, %s40
      %p49 = scmp.eq.s32.totalorder %s32, 1
      %p50 = por %p48, %p49
      %p51 = scmp.ne.s32.totalorder %s40, %s41
      %p52 = scmp.eq.s32.totalorder %s32, 0
      %p53 = por %p51, %p52
      %p54 = scmp.ne.s32.totalorder %s40, %s41
      %p55 = scmp.eq.s32.totalorder %s33, 1
      %p56 = por %p54, %p55
      %p58 = scmp.ne.s32.totalorder %s41, %s57
      %p59 = scmp.eq.s32.totalorder %s33, 0
      %p60 = por %p58, %p59
      %s61 = ssub.s32 %s27, %s34
      %p62 = scmp.eq.s32.totalorder %s61, 0
      %s64 = sadd.s32 %s63, 1
      %s65 = scalar_select %p62, %s63, %s64
      %p68 = pneg %p62
      %p69 = scmp.eq.s32.totalorder %s27, 1
      %p70 = por %p68, %p69
      %p71 = scmp.ne.s32.totalorder %s63, %s66
      %p72 = scmp.eq.s32.totalorder %s27, 0
      %p73 = por %p71, %p72
      %p74 = scmp.ne.s32.totalorder %s63, %s66
      %p75 = scmp.eq.s32.totalorder %s32, 1
      %p76 = por %p74, %p75
      %p77 = scmp.ne.s32.totalorder %s66, %s67
      %p78 = scmp.eq.s32.totalorder %s32, 0
      %p79 = por %p77, %p78
      %p80 = scmp.ne.s32.totalorder %s66, %s67
      %p81 = scmp.eq.s32.totalorder %s33, 1
      %p82 = por %p80, %p81
      %p84 = scmp.ne.s32.totalorder %s67, %s83
      %p85 = scmp.eq.s32.totalorder %s33, 0
      %p86 = por %p84, %p85
      %s88 = sadd.s32 %s87, 1
      %p91 = scmp.eq.s32.totalorder %s27, 1
      %p92 = scmp.ne.s32.totalorder %s87, %s89
      %p93 = scmp.eq.s32.totalorder %s27, 0
      %p94 = por %p92, %p93
      %p95 = scmp.ne.s32.totalorder %s87, %s89
      %p96 = scmp.eq.s32.totalorder %s32, 1
      %p97 = por %p95, %p96
      %p98 = scmp.ne.s32.totalorder %s89, %s90
      %p99 = scmp.eq.s32.totalorder %s32, 0
      %p100 = por %p98, %p99
      %p101 = scmp.ne.s32.totalorder %s89, %s90
      %p102 = scmp.eq.s32.totalorder %s33, 1
      %p103 = por %p101, %p102
      %p105 = scmp.ne.s32.totalorder %s90, %s104
      %p106 = scmp.eq.s32.totalorder %s33, 0
      %p107 = por %p105, %p106
      %s109 = sadd.s32 %s108, 1
      %p112 = scmp.eq.s32.totalorder %s27, 1
      %p113 = scmp.ne.s32.totalorder %s108, %s110
      %p114 = scmp.eq.s32.totalorder %s27, 0
      %p115 = por %p113, %p114
      %p116 = scmp.ne.s32.totalorder %s108, %s110
      %p117 = scmp.eq.s32.totalorder %s32, 1
      %p118 = por %p116, %p117
      %p119 = scmp.ne.s32.totalorder %s110, %s111
      %p120 = scmp.eq.s32.totalorder %s32, 0
      %p121 = por %p119, %p120
      %p122 = scmp.ne.s32.totalorder %s110, %s111
      %p123 = scmp.eq.s32.totalorder %s33, 1
      %p124 = por %p122, %p123
      %p126 = scmp.ne.s32.totalorder %s111, %s125
      %p127 = scmp.eq.s32.totalorder %s33, 0
      %p128 = por %p126, %p127
      %s130 = sadd.s32 %s129, 1
      %p133 = scmp.eq.s32.totalorder %s27, 1
      %p134 = scmp.ne.s32.totalorder %s129, %s131
      %p135 = scmp.eq.s32.totalorder %s27, 0
      %p136 = por %p134, %p135
      %p137 = scmp.ne.s32.totalorder %s129, %s131
      %p138 = scmp.eq.s32.totalorder %s32, 1
      %p139 = por %p137, %p138
      %p140 = scmp.ne.s32.totalorder %s131, %s132
      %p141 = scmp.eq.s32.totalorder %s32, 0
      %p142 = por %p140, %p141
      %p143 = scmp.ne.s32.totalorder %s131, %s132
      %p144 = scmp.eq.s32.totalorder %s33, 1
      %p145 = por %p143, %p144
      %p147 = scmp.ne.s32.totalorder %s132, %s146
      %p148 = scmp.eq.s32.totalorder %s33, 0
      %p149 = por %p147, %p148
      %s151 = sadd.s32 %s150, 1
      %p154 = scmp.eq.s32.totalorder %s27, 1
      %p155 = scmp.ne.s32.totalorder %s150, %s152
      %p156 = scmp.eq.s32.totalorder %s27, 0
      %p157 = por %p155, %p156
      %p158 = scmp.ne.s32.totalorder %s150, %s152
      %p159 = scmp.eq.s32.totalorder %s32, 1
      %p160 = por %p158, %p159
      %p161 = scmp.ne.s32.totalorder %s152, %s153
      %p162 = scmp.eq.s32.totalorder %s32, 0
      %p163 = por %p161, %p162
      %p164 = scmp.ne.s32.totalorder %s152, %s153
      %p165 = scmp.eq.s32.totalorder %s33, 1
      %p166 = por %p164, %p165
      %p168 = scmp.ne.s32.totalorder %s153, %s167
      %p169 = scmp.eq.s32.totalorder %s33, 0
      %p170 = por %p168, %p169
      %s172 = sadd.s32 %s171, 1
      %p175 = scmp.eq.s32.totalorder %s27, 1
      %p176 = scmp.ne.s32.totalorder %s171, %s173
      %p177 = scmp.eq.s32.totalorder %s27, 0
      %p178 = por %p176, %p177
      %p179 = scmp.ne.s32.totalorder %s171, %s173
      %p180 = scmp.eq.s32.totalorder %s32, 1
      %p181 = por %p179, %p180
      %p182 = scmp.ne.s32.totalorder %s173, %s174
      %p183 = scmp.eq.s32.totalorder %s32, 0
      %p184 = por %p182, %p183
      %p185 = scmp.ne.s32.totalorder %s173, %s174
      %p186 = scmp.eq.s32.totalorder %s33, 1
      %p187 = por %p185, %p186
      %p189 = scmp.ne.s32.totalorder %s174, %s188
      %p190 = scmp.eq.s32.totalorder %s33, 0
      %p191 = por %p189, %p190
      %s193 = sadd.s32 %s192, 1
      %p196 = scmp.eq.s32.totalorder %s27, 1
      %p197 = scmp.ne.s32.totalorder %s192, %s194
      %p198 = scmp.eq.s32.totalorder %s27, 0
      %p199 = por %p197, %p198
      %p200 = scmp.ne.s32.totalorder %s192, %s194
      %p201 = scmp.eq.s32.totalorder %s32, 1
      %p202 = por %p200, %p201
      %p203 = scmp.ne.s32.totalorder %s194, %s195
      %p204 = scmp.eq.s32.totalorder %s32, 0
      %p205 = por %p203, %p204
      %p206 = scmp.ne.s32.totalorder %s194, %s195
      %p207 = scmp.eq.s32.totalorder %s33, 1
      %p208 = por %p206, %p207
      %p210 = scmp.ne.s32.totalorder %s195, %s209
      %p211 = scmp.eq.s32.totalorder %s33, 0
      %p212 = por %p210, %p211
      %s214 = sadd.s32 %s213, 1
      %p217 = scmp.eq.s32.totalorder %s27, 1
      %p218 = scmp.ne.s32.totalorder %s213, %s215
      %p219 = scmp.eq.s32.totalorder %s27, 0
      %p220 = por %p218, %p219
      %p221 = scmp.ne.s32.totalorder %s213, %s215
      %p222 = scmp.eq.s32.totalorder %s32, 1
      %p223 = por %p221, %p222
      %p224 = scmp.ne.s32.totalorder %s215, %s216
      %p225 = scmp.eq.s32.totalorder %s32, 0
      %p226 = por %p224, %p225
      %p227 = scmp.ne.s32.totalorder %s215, %s216
      %p228 = scmp.eq.s32.totalorder %s33, 1
      %p229 = por %p227, %p228
      %p231 = scmp.ne.s32.totalorder %s216, %s230
      %p232 = scmp.eq.s32.totalorder %s33, 0
      %p233 = por %p231, %p232
      %s235 = sadd.s32 %s234, 1
      %p238 = scmp.eq.s32.totalorder %s27, 1
      %p239 = scmp.ne.s32.totalorder %s234, %s236
      %p240 = scmp.eq.s32.totalorder %s27, 0
      %p241 = por %p239, %p240
      %p242 = scmp.ne.s32.totalorder %s234, %s236
      %p243 = scmp.eq.s32.totalorder %s32, 1
      %p244 = por %p242, %p243
      %p245 = scmp.ne.s32.totalorder %s236, %s237
      %p246 = scmp.eq.s32.totalorder %s32, 0
      %p247 = por %p245, %p246
      %p248 = scmp.ne.s32.totalorder %s236, %s237
      %p249 = scmp.eq.s32.totalorder %s33, 1
      %p250 = por %p248, %p249
      %p252 = scmp.ne.s32.totalorder %s237, %s251
      %p253 = scmp.eq.s32.totalorder %s33, 0
      %p254 = por %p252, %p253
      %s256 = sadd.s32 %s255, 1
      %p259 = scmp.eq.s32.totalorder %s27, 1
      %p260 = scmp.ne.s32.totalorder %s255, %s257
      %p261 = scmp.eq.s32.totalorder %s27, 0
      %p262 = por %p260, %p261
      %p263 = scmp.ne.s32.totalorder %s255, %s257
      %p264 = scmp.eq.s32.totalorder %s32, 1
      %p265 = por %p263, %p264
      %p266 = scmp.ne.s32.totalorder %s257, %s258
      %p267 = scmp.eq.s32.totalorder %s32, 0
      %p268 = por %p266, %p267
      %p269 = scmp.ne.s32.totalorder %s257, %s258
      %p270 = scmp.eq.s32.totalorder %s33, 1
      %p271 = por %p269, %p270
      %p273 = scmp.ne.s32.totalorder %s258, %s272
      %p274 = scmp.eq.s32.totalorder %s33, 0
      %p275 = por %p273, %p274
      %s277 = sadd.s32 %s276, 1
      %p280 = scmp.eq.s32.totalorder %s27, 1
      %p281 = scmp.ne.s32.totalorder %s276, %s278
      %p282 = scmp.eq.s32.totalorder %s27, 0
      %p283 = por %p281, %p282
      %p284 = scmp.ne.s32.totalorder %s276, %s278
      %p285 = scmp.eq.s32.totalorder %s32, 1
      %p286 = por %p284, %p285
      %p287 = scmp.ne.s32.totalorder %s278, %s279
      %p288 = scmp.eq.s32.totalorder %s32, 0
      %p289 = por %p287, %p288
      %p290 = scmp.ne.s32.totalorder %s278, %s279
      %p291 = scmp.eq.s32.totalorder %s33, 1
      %p292 = por %p290, %p291
      %p294 = scmp.ne.s32.totalorder %s279, %s293
      %p295 = scmp.eq.s32.totalorder %s33, 0
      %p296 = por %p294, %p295
      %s298 = sadd.s32 %s297, 1
      %p301 = scmp.eq.s32.totalorder %s27, 1
      %p302 = scmp.ne.s32.totalorder %s297, %s299
      %p303 = scmp.eq.s32.totalorder %s27, 0
      %p304 = por %p302, %p303
      %p305 = scmp.ne.s32.totalorder %s297, %s299
      %p306 = scmp.eq.s32.totalorder %s32, 1
      %p307 = por %p305, %p306
      %p308 = scmp.ne.s32.totalorder %s299, %s300
      %p309 = scmp.eq.s32.totalorder %s32, 0
      %p310 = por %p308, %p309
      %p311 = scmp.ne.s32.totalorder %s299, %s300
      %p312 = scmp.eq.s32.totalorder %s33, 1
      %p313 = por %p311, %p312
      %p315 = scmp.ne.s32.totalorder %s300, %s314
      %p316 = scmp.eq.s32.totalorder %s33, 0
      %p317 = por %p315, %p316
      %s319 = sadd.s32 %s318, 1
      %p322 = scmp.eq.s32.totalorder %s27, 1
      %p323 = scmp.ne.s32.totalorder %s318, %s320
      %p324 = scmp.eq.s32.totalorder %s27, 0
      %p325 = por %p323, %p324
      %p326 = scmp.ne.s32.totalorder %s318, %s320
      %p327 = scmp.eq.s32.totalorder %s32, 1
      %p328 = por %p326, %p327
      %p329 = scmp.ne.s32.totalorder %s320, %s321
      %p330 = scmp.eq.s32.totalorder %s32, 0
      %p331 = por %p329, %p330
      %p332 = scmp.ne.s32.totalorder %s320, %s321
      %p333 = scmp.eq.s32.totalorder %s33, 1
      %p334 = por %p332, %p333
      %p336 = scmp.ne.s32.totalorder %s321, %s335
      %p337 = scmp.eq.s32.totalorder %s33, 0
      %p338 = por %p336, %p337
      %s340 = sadd.s32 %s339, 1
      %p343 = scmp.eq.s32.totalorder %s27, 1
      %p344 = scmp.ne.s32.totalorder %s339, %s341
      %p345 = scmp.eq.s32.totalorder %s27, 0
      %p346 = por %p344, %p345
      %p347 = scmp.ne.s32.totalorder %s339, %s341
      %p348 = scmp.eq.s32.totalorder %s32, 1
      %p349 = por %p347, %p348
      %p350 = scmp.ne.s32.totalorder %s341, %s342
      %p351 = scmp.eq.s32.totalorder %s32, 0
      %p352 = por %p350, %p351
      %p353 = scmp.ne.s32.totalorder %s341, %s342
      %p354 = scmp.eq.s32.totalorder %s33, 1
      %p355 = por %p353, %p354
      %p357 = scmp.ne.s32.totalorder %s342, %s356
      %p358 = scmp.eq.s32.totalorder %s33, 0
      %p359 = por %p357, %p358
      %s361 = sadd.s32 %s360, 1
      %p364 = scmp.eq.s32.totalorder %s27, 1
      %p365 = scmp.ne.s32.totalorder %s360, %s362
      %p366 = scmp.eq.s32.totalorder %s27, 0
      %p367 = por %p365, %p366
      %p368 = scmp.ne.s32.totalorder %s360, %s362
      %p369 = scmp.eq.s32.totalorder %s32, 1
      %p370 = por %p368, %p369
      %p371 = scmp.ne.s32.totalorder %s362, %s363
      %p372 = scmp.eq.s32.totalorder %s32, 0
      %p373 = por %p371, %p372
      %p374 = scmp.ne.s32.totalorder %s362, %s363
      %p375 = scmp.eq.s32.totalorder %s33, 1
      %p376 = por %p374, %p375
      %p378 = scmp.ne.s32.totalorder %s363, %s377
      %p379 = scmp.eq.s32.totalorder %s33, 0
      %p380 = por %p378, %p379
      %s382 = sadd.s32 %s381, 1
      %p385 = scmp.eq.s32.totalorder %s27, 1
      %p386 = scmp.ne.s32.totalorder %s381, %s383
      %p387 = scmp.eq.s32.totalorder %s27, 0
      %p388 = por %p386, %p387
      %p389 = scmp.ne.s32.totalorder %s381, %s383
      %p390 = scmp.eq.s32.totalorder %s32, 1
      %p391 = por %p389, %p390
      %p392 = scmp.ne.s32.totalorder %s383, %s384
      %p393 = scmp.eq.s32.totalorder %s32, 0
      %p394 = por %p392, %p393
      %p395 = scmp.ne.s32.totalorder %s383, %s384
      %p396 = scmp.eq.s32.totalorder %s33, 1
      %p397 = por %p395, %p396
      %p399 = scmp.ne.s32.totalorder %s384, %s398
      %p400 = scmp.eq.s32.totalorder %s33, 0
      %p401 = por %p399, %p400
      %s403 = sadd.s32 %s402, 1
      %p406 = scmp.eq.s32.totalorder %s27, 1
      %p407 = scmp.ne.s32.totalorder %s402, %s404
      %p408 = scmp.eq.s32.totalorder %s27, 0
      %p409 = por %p407, %p408
      %p410 = scmp.ne.s32.totalorder %s402, %s404
      %p411 = scmp.eq.s32.totalorder %s32, 1
      %p412 = por %p410, %p411
      %p413 = scmp.ne.s32.totalorder %s404, %s405
      %p414 = scmp.eq.s32.totalorder %s32, 0
      %p415 = por %p413, %p414
      %p416 = scmp.ne.s32.totalorder %s404, %s405
      %p417 = scmp.eq.s32.totalorder %s33, 1
      %p418 = por %p416, %p417
      %p420 = scmp.ne.s32.totalorder %s405, %s419
      %p421 = scmp.eq.s32.totalorder %s33, 0
      %p422 = por %p420, %p421
      %s423 = ssub.s32 %s27, %s34
      %p424 = scmp.eq.s32.totalorder %s423, 0
      %s426 = sadd.s32 %s425, 1
      %s427 = scalar_select %p424, %s425, %s426
      %p430 = pneg %p424
      %p431 = scmp.eq.s32.totalorder %s27, 1
      %p432 = por %p430, %p431
      %p433 = scmp.ne.s32.totalorder %s425, %s428
      %p434 = scmp.eq.s32.totalorder %s27, 0
      %p435 = por %p433, %p434
      %p436 = scmp.ne.s32.totalorder %s425, %s428
      %p437 = scmp.eq.s32.totalorder %s32, 1
      %p438 = por %p436, %p437
      %p439 = scmp.ne.s32.totalorder %s428, %s429
      %p440 = scmp.eq.s32.totalorder %s32, 0
      %p441 = por %p439, %p440
      %p442 = scmp.ne.s32.totalorder %s428, %s429
      %p443 = scmp.eq.s32.totalorder %s33, 1
      %p444 = por %p442, %p443
      %p446 = scmp.ne.s32.totalorder %s429, %s445
      %p447 = scmp.eq.s32.totalorder %s33, 0
      %p448 = por %p446, %p447
      %p449 = scmp.le.s32.totalorder 1, %s27
      %p450 = scmp.lt.s32.totalorder %s27, 3
      %p451 = pnand %p449, %p450
      %p452 = pneg %p451
      // Predicated region
      $region9: #{tpu_custom_call.1} parent=5 // pred_check
        _
      $region10: #{tpu_custom_call.1} parent=5 // pred_check_branch
        %454 = sbr.rel (%p451) target = $region12
      $region11: #{tpu_custom_call.1} parent=5 // pred_region
        %s455 = ssub.s32 %s27, 1
        // Predicated region
        $region13: #{tpu_custom_call.1} parent=11 // pred_check
          %p456 = pneg %p100
        $region14: #{tpu_custom_call.1} parent=11 // pred_check_branch
          %458 = sbr.rel (%p456) target = $region16
        $region15: #{tpu_custom_call.1} parent=11 // pred_region
          _
        $region16: #{tpu_custom_call.1} parent=11 // pred_fallthru
          _
        // Predicated region
        $region17: #{tpu_custom_call.1} parent=11 // pred_check
          %p459 = pneg %p121
        $region18: #{tpu_custom_call.1} parent=11 // pred_check_branch
          %461 = sbr.rel (%p459) target = $region20
        $region19: #{tpu_custom_call.1} parent=11 // pred_region
          _
        $region20: #{tpu_custom_call.1} parent=11 // pred_fallthru
          _
        // Predicated region
        $region21: #{tpu_custom_call.1} parent=11 // pred_check
          %p462 = pneg %p142
        $region22: #{tpu_custom_call.1} parent=11 // pred_check_branch
          %464 = sbr.rel (%p462) target = $region24
        $region23: #{tpu_custom_call.1} parent=11 // pred_region
          _
        $region24: #{tpu_custom_call.1} parent=11 // pred_fallthru
          _
        // Predicated region
        $region25: #{tpu_custom_call.1} parent=11 // pred_check
          %p465 = pneg %p163
        $region26: #{tpu_custom_call.1} parent=11 // pred_check_branch
          %467 = sbr.rel (%p465) target = $region28
        $region27: #{tpu_custom_call.1} parent=11 // pred_region
          _
        $region28: #{tpu_custom_call.1} parent=11 // pred_fallthru
          _
        // Predicated region
        $region29: #{tpu_custom_call.1} parent=11 // pred_check
          %p468 = pneg %p184
        $region30: #{tpu_custom_call.1} parent=11 // pred_check_branch
          %470 = sbr.rel (%p468) target = $region32
        $region31: #{tpu_custom_call.1} parent=11 // pred_region
          _
        $region32: #{tpu_custom_call.1} parent=11 // pred_fallthru
          _
        // Predicated region
        $region33: #{tpu_custom_call.1} parent=11 // pred_check
          %p471 = pneg %p205
        $region34: #{tpu_custom_call.1} parent=11 // pred_check_branch
          %473 = sbr.rel (%p471) target = $region36
        $region35: #{tpu_custom_call.1} parent=11 // pred_region
          _
        $region36: #{tpu_custom_call.1} parent=11 // pred_fallthru
          _
        // Predicated region
        $region37: #{tpu_custom_call.1} parent=11 // pred_check
          %p474 = pneg %p226
        $region38: #{tpu_custom_call.1} parent=11 // pred_check_branch
          %476 = sbr.rel (%p474) target = $region40
        $region39: #{tpu_custom_call.1} parent=11 // pred_region
          _
        $region40: #{tpu_custom_call.1} parent=11 // pred_fallthru
          _
        // Predicated region
        $region41: #{tpu_custom_call.1} parent=11 // pred_check
          %p477 = pneg %p247
        $region42: #{tpu_custom_call.1} parent=11 // pred_check_branch
          %479 = sbr.rel (%p477) target = $region44
        $region43: #{tpu_custom_call.1} parent=11 // pred_region
          _
        $region44: #{tpu_custom_call.1} parent=11 // pred_fallthru
          _
        // Predicated region
        $region45: #{tpu_custom_call.1} parent=11 // pred_check
          %p480 = pneg %p268
        $region46: #{tpu_custom_call.1} parent=11 // pred_check_branch
          %482 = sbr.rel (%p480) target = $region48
        $region47: #{tpu_custom_call.1} parent=11 // pred_region
          _
        $region48: #{tpu_custom_call.1} parent=11 // pred_fallthru
          _
        // Predicated region
        $region49: #{tpu_custom_call.1} parent=11 // pred_check
          %p483 = pneg %p289
        $region50: #{tpu_custom_call.1} parent=11 // pred_check_branch
          %485 = sbr.rel (%p483) target = $region52
        $region51: #{tpu_custom_call.1} parent=11 // pred_region
          _
        $region52: #{tpu_custom_call.1} parent=11 // pred_fallthru
          _
        // Predicated region
        $region53: #{tpu_custom_call.1} parent=11 // pred_check
          %p486 = pneg %p310
        $region54: #{tpu_custom_call.1} parent=11 // pred_check_branch
          %488 = sbr.rel (%p486) target = $region56
        $region55: #{tpu_custom_call.1} parent=11 // pred_region
          _
        $region56: #{tpu_custom_call.1} parent=11 // pred_fallthru
          _
        // Predicated region
        $region57: #{tpu_custom_call.1} parent=11 // pred_check
          %p489 = pneg %p331
        $region58: #{tpu_custom_call.1} parent=11 // pred_check_branch
          %491 = sbr.rel (%p489) target = $region60
        $region59: #{tpu_custom_call.1} parent=11 // pred_region
          _
        $region60: #{tpu_custom_call.1} parent=11 // pred_fallthru
          _
        // Predicated region
        $region61: #{tpu_custom_call.1} parent=11 // pred_check
          %p492 = pneg %p352
        $region62: #{tpu_custom_call.1} parent=11 // pred_check_branch
          %494 = sbr.rel (%p492) target = $region64
        $region63: #{tpu_custom_call.1} parent=11 // pred_region
          _
        $region64: #{tpu_custom_call.1} parent=11 // pred_fallthru
          _
        // Predicated region
        $region65: #{tpu_custom_call.1} parent=11 // pred_check
          %p495 = pneg %p373
        $region66: #{tpu_custom_call.1} parent=11 // pred_check_branch
          %497 = sbr.rel (%p495) target = $region68
        $region67: #{tpu_custom_call.1} parent=11 // pred_region
          _
        $region68: #{tpu_custom_call.1} parent=11 // pred_fallthru
          _
        // Predicated region
        $region69: #{tpu_custom_call.1} parent=11 // pred_check
          %p498 = pneg %p394
        $region70: #{tpu_custom_call.1} parent=11 // pred_check_branch
          %500 = sbr.rel (%p498) target = $region72
        $region71: #{tpu_custom_call.1} parent=11 // pred_region
          _
        $region72: #{tpu_custom_call.1} parent=11 // pred_fallthru
          _
        // Predicated region
        $region73: #{tpu_custom_call.1} parent=11 // pred_check
          %p501 = pneg %p415
        $region74: #{tpu_custom_call.1} parent=11 // pred_check_branch
          %503 = sbr.rel (%p501) target = $region76
        $region75: #{tpu_custom_call.1} parent=11 // pred_region
          _
        $region76: #{tpu_custom_call.1} parent=11 // pred_fallthru
          _
      $region12: #{tpu_custom_call.1} parent=5 // pred_fallthru
        _
      %p504 = scmp.lt.s32.totalorder %s27, 2
      // Predicated region
      $region77: #{tpu_custom_call.1} parent=5 // pred_check
        %p505 = pneg %p504
      $region78: #{tpu_custom_call.1} parent=5 // pred_check_branch
        %507 = sbr.rel (%p505) target = $region80
      $region79: #{tpu_custom_call.1} parent=5 // pred_region
        // Predicated region
        $region81: #{tpu_custom_call.1} parent=79 // pred_check
          %p508 = pneg %p47
        $region82: #{tpu_custom_call.1} parent=79 // pred_check_branch
          %510 = sbr.rel (%p508) target = $region84
        $region83: #{tpu_custom_call.1} parent=79 // pred_region
          %p511 = scmp.lt.s32.totalorder %s27, 1
          %s512 = scalar_select %p511, %s27, 1
          %s513 = smul.addr %s512, 8
          %s514 = scalar_lea.vmem %s0, %s513
        $region84: #{tpu_custom_call.1} parent=79 // pred_fallthru
          _
        // Predicated region
        $region85: #{tpu_custom_call.1} parent=79 // pred_check
          %p515 = pneg %p73
        $region86: #{tpu_custom_call.1} parent=79 // pred_check_branch
          %517 = sbr.rel (%p515) target = $region88
        $region87: #{tpu_custom_call.1} parent=79 // pred_region
          %p518 = scmp.lt.s32.totalorder %s27, 1
          %s519 = scalar_select %p518, %s27, 1
          %s520 = scalar_lea.vmem %s1, %s519
        $region88: #{tpu_custom_call.1} parent=79 // pred_fallthru
          _
      $region80: #{tpu_custom_call.1} parent=5 // pred_fallthru
        _
      %p521 = scmp.le.s32.totalorder 1, %s27
      %p522 = scmp.lt.s32.totalorder %s27, 3
      %p523 = pnand %p521, %p522
      %p524 = pneg %p523
      // Predicated region
      $region89: #{tpu_custom_call.1} parent=5 // pred_check
        _
      $region90: #{tpu_custom_call.1} parent=5 // pred_check_branch
        %526 = sbr.rel (%p523) target = $region92
      $region91: #{tpu_custom_call.1} parent=5 // pred_region
        %s527 = ssub.s32 %s27, 1
        %p528 = scmp.lt.s32.totalorder %s32, 1
        %s529 = scalar_select %p528, %s32, 1
        %s530 = smul.addr %s529, 8
        %s531 = scalar_lea.vmem %s0, %s530
        %p532 = pneg %p53
        %p533 = pneg %p50
        %p534 = scmp.lt.s32.totalorder %s32, 1
        %s535 = scalar_select %p534, %s32, 1
        %s536 = scalar_lea.vmem %s1, %s535
        %p537 = pneg %p79
        %p538 = pneg %p76
        %p539 = pneg %p100
        %p540 = pneg %p97
        %p541 = pneg %p121
        %p542 = pneg %p118
        %p543 = pneg %p142
        %p544 = pneg %p139
        %p545 = pneg %p163
        %p546 = pneg %p160
        %p547 = pneg %p184
        %p548 = pneg %p181
        %p549 = pneg %p205
        %p550 = pneg %p202
        %p551 = pneg %p226
        %p552 = pneg %p223
        %p553 = pneg %p247
        %p554 = pneg %p244
        %p555 = pneg %p268
        %p556 = pneg %p265
        %p557 = pneg %p289
        %p558 = pneg %p286
        %p559 = pneg %p310
        %p560 = pneg %p307
        %p561 = pneg %p331
        %p562 = pneg %p328
        %p563 = pneg %p352
        %p564 = pneg %p349
        %p565 = pneg %p373
        %p566 = pneg %p370
        %p567 = pneg %p394
        %p568 = pneg %p391
        %p569 = pneg %p415
        %p570 = pneg %p412
        %p571 = pneg %p441
        %p572 = pneg %p438
        %s573 = sand.u32 %s428, 1
        %s574 = scalar_lea.sflag [#allocation3], %s573
        %s575 = sand.u32 %s428, 1
        %s576 = smul.addr %s575, 8
        %s577 = scalar_lea.vmem [#allocation2], %s576
        %p578 = scmp.lt.s32.totalorder %s32, 1
        %s579 = scalar_select %p578, %s32, 1
        %s580 = smul.addr %s579, 8
        %s581 = scalar_lea.vmem %s0, %s580
        %p582 = scmp.lt.s32.totalorder %s32, 1
        %s583 = scalar_select %p582, %s32, 1
        %s584 = scalar_lea.vmem %s1, %s583
        %v585 = vld [vmem:[%s581] sm:$0xff]
        %v586 = vld [vmem:[%s6] sm:$0x1]
        %v587 = vld [vmem:[%s7] sm:$0x1]
        %vm588 = vcmask 261120
        %v589 = vsel %vm588, %v585, 0.0
        %590 = vadd.xlane.f32.xlu0 %v589
        %v591 = vpop.xlane.xlu0 %590
        %v592 = vrcp.pop 32.0
        %v593 = vmul.f32 %v591, %v592
        %v594 = vsub.f32 %v585, %v593
        %v595 = vmul.f32 %v594, %v594
        %v596 = vsel %vm588, %v595, 0.0
        %597 = vadd.xlane.f32.xlu0 %v596
        %v598 = vpop.xlane.xlu0 %597
        %v599 = vmul.f32 %v598, %v592
        %v600 = vadd.f32 %v599, 1e-05
        %v601 = vrsqrt.pop %v600
        %v602 = vmul.f32 %v594, %v601
        %v604 = vlaneseq
        %v605 = vshrl.u32 %v604, 7
        %v606 = vsub.s32 0, %v605
        %v607 = vrot.slane %v586, %v606
        %v609 = vmul.f32 %v602, %v607
        %v611 = vlaneseq
        %v612 = vshrl.u32 %v611, 7
        %v613 = vsub.s32 0, %v612
        %v614 = vrot.slane %v587, %v613
        %v616 = vadd.f32 %v609, %v614
        %v617 = vld [vmem:[%s584] sm:$0x1]
        %v618 = vld [vmem:[%s2] sm:$0xff]
        %v619 = vld [vmem:[%s2 + $0x8] sm:$0xff]
        %v620 = vld [vmem:[%s3] sm:$0x1]
        %vm621 = vcmask 130048
        %v623 = vsel %vm621, %v617, 0
        %625 = vmatprep.subr.mxu0 0.0
        %626 = vmatpush1.msra.mxu0 %v618
        %627 = vmatprep.subr.mxu0 0.0
        %628 = vmatpush1.msra.mxu0 %v619
        %629 = vmatprep.subr.mxu0 0.0
        %630 = vmatpush1.msra.mxu0 0.0
        %631 = vmatprep.subr.mxu0 0.0
        %632 = vmatpush1.msra.mxu0 0.0
        %633 = vmatprep.subr.mxu0 0.0
        %634 = vmatpush1.msra.mxu0 0.0
        %635 = vmatprep.subr.mxu0 0.0
        %636 = vmatpush1.msra.mxu0 0.0
        %637 = vmatprep.subr.mxu0 0.0
        %638 = vmatpush1.msra.mxu0 0.0
        %639 = vmatprep.subr.mxu0 0.0
        %640 = vmatpush1.msra.mxu0 0.0
        %641 = vmatprep.subr.mxu0 0.0
        %642 = vmatpush1.msra.mxu0 0.0
        %643 = vmatprep.subr.mxu0 0.0
        %644 = vmatpush1.msra.mxu0 0.0
        %645 = vmatprep.subr.mxu0 0.0
        %646 = vmatpush1.msra.mxu0 0.0
        %647 = vmatprep.subr.mxu0 0.0
        %648 = vmatpush1.msra.mxu0 0.0
        %649 = vmatprep.subr.mxu0 0.0
        %650 = vmatpush1.msra.mxu0 0.0
        %651 = vmatprep.subr.mxu0 0.0
        %652 = vmatpush1.msra.mxu0 0.0
        %653 = vmatprep.subr.mxu0 0.0
        %654 = vmatpush1.msra.mxu0 0.0
        %655 = vmatprep.subr.mxu0 0.0
        %656 = vmatpush1.msra.mxu0 0.0
        %657 = vmatprep.subr.mxu0 0.0
        %658 = vmatpush1.msra.mxu0 0.0
        %659 = vmatprep.subr.mxu0 0.0
        %660 = vmatpush1.msra.mxu0 0.0
        %661 = vmatprep.subr.mxu0 0.0
        %662 = vmatpush1.msra.mxu0 0.0
        %663 = vmatprep.subr.mxu0 0.0
        %664 = vmatpush1.msra.mxu0 0.0
        %665 = vmatprep.subr.mxu0 0.0
        %666 = vmatpush1.msra.mxu0 0.0
        %667 = vmatprep.subr.mxu0 0.0
        %668 = vmatpush1.msra.mxu0 0.0
        %669 = vmatprep.subr.mxu0 0.0
        %670 = vmatpush1.msra.mxu0 0.0
        %671 = vmatprep.subr.mxu0 0.0
        %672 = vmatpush1.msra.mxu0 0.0
        %673 = vmatprep.subr.mxu0 0.0
        %674 = vmatpush1.msra.mxu0 0.0
        %675 = vmatprep.subr.mxu0 0.0
        %676 = vmatpush1.msra.mxu0 0.0
        %677 = vmatprep.subr.mxu0 0.0
        %678 = vmatpush1.msra.mxu0 0.0
        %679 = vmatprep.subr.mxu0 0.0
        %680 = vmatpush1.msra.mxu0 0.0
        %681 = vmatprep.subr.mxu0 0.0
        %682 = vmatpush1.msra.mxu0 0.0
        %683 = vmatprep.subr.mxu0 0.0
        %684 = vmatpush1.msra.mxu0 0.0
        %685 = vmatprep.subr.mxu0 0.0
        %686 = vmatpush1.msra.mxu0 0.0
        %687 = vmatprep.subr.mxu0 0.0
        %688 = vmatpush1.msra.mxu0 0.0
        %689 = vmatprep.mubr.f32.mxu0 0.0
        %690 = vmatmul.mubr.f32.gmra.mrb[0].mxu0 %v623
        %v691 = vpop.f32.mrb[0].mxu0
        %v692 = vadd.f32 %v620, %v691
        %v693 = vpop.f32.mrb[0].mxu0
        %694 = vdwg.mxu0
        %v695 = vld [vmem:[%s4] sm:$0x1]
        %v696 = vld [vmem:[%s5] sm:$0x1]
        %vm697 = vcmask 253952
        %v698 = vsel %vm697, %v692, 0.0
        %699 = vadd.xlane.f32.xlu0 %v698
        %v700 = vpop.xlane.xlu0 %699
        %v701 = vmul.f32 %v700, %v592
        %v702 = vsub.f32 %v692, %v701
        %v703 = vmul.f32 %v702, %v702
        %v704 = vsel %vm697, %v703, 0.0
        %705 = vadd.xlane.f32.xlu0 %v704
        %v706 = vpop.xlane.xlu0 %705
        %v707 = vmul.f32 %v706, %v592
        %v708 = vadd.f32 %v707, 1e-05
        %v709 = vrsqrt.pop %v708
        %v710 = vmul.f32 %v702, %v709
        %v711 = vmul.f32 %v710, %v695
        %v712 = vadd.f32 %v711, %v696
        %v713 = vld [vmem:[%s8] sm:$0xff]
        %v714 = vld [vmem:[%s8 + $0x8] sm:$0xff]
        %v715 = vld [vmem:[%s8 + $0x10] sm:$0xff]
        %v716 = vld [vmem:[%s8 + $0x18] sm:$0xff]
        %v717 = vld [vmem:[%s9] sm:$0x1]
        %v719 = vlaneseq
        %v720 = vshrl.u32 %v719, 7
        %v721 = vsub.s32 0, %v720
        %v722 = vrot.slane %v717, %v721
        %v725 = vsel %vm588, %v616, 0
        %727 = vmatprep.subr.mxu0 0.0
        %728 = vmatpush1.msra.mxu0 %v713
        %729 = vmatprep.subr.mxu0 0.0
        %730 = vmatpush1.msra.mxu0 %v714
        %731 = vmatprep.subr.mxu0 0.0
        %732 = vmatpush1.msra.mxu0 %v715
        %733 = vmatprep.subr.mxu0 0.0
        %734 = vmatpush1.msra.mxu0 %v716
        %735 = vmatprep.subr.mxu0 0.0
        %736 = vmatpush1.msra.mxu0 0.0
        %737 = vmatprep.subr.mxu0 0.0
        %738 = vmatpush1.msra.mxu0 0.0
        %739 = vmatprep.subr.mxu0 0.0
        %740 = vmatpush1.msra.mxu0 0.0
        %741 = vmatprep.subr.mxu0 0.0
        %742 = vmatpush1.msra.mxu0 0.0
        %743 = vmatprep.subr.mxu0 0.0
        %744 = vmatpush1.msra.mxu0 0.0
        %745 = vmatprep.subr.mxu0 0.0
        %746 = vmatpush1.msra.mxu0 0.0
        %747 = vmatprep.subr.mxu0 0.0
        %748 = vmatpush1.msra.mxu0 0.0
        %749 = vmatprep.subr.mxu0 0.0
        %750 = vmatpush1.msra.mxu0 0.0
        %751 = vmatprep.subr.mxu0 0.0
        %752 = vmatpush1.msra.mxu0 0.0
        %753 = vmatprep.subr.mxu0 0.0
        %754 = vmatpush1.msra.mxu0 0.0
        %755 = vmatprep.subr.mxu0 0.0
        %756 = vmatpush1.msra.mxu0 0.0
        %757 = vmatprep.subr.mxu0 0.0
        %758 = vmatpush1.msra.mxu0 0.0
        %759 = vmatprep.subr.mxu0 0.0
        %760 = vmatpush1.msra.mxu0 0.0
        %761 = vmatprep.subr.mxu0 0.0
        %762 = vmatpush1.msra.mxu0 0.0
        %763 = vmatprep.subr.mxu0 0.0
        %764 = vmatpush1.msra.mxu0 0.0
        %765 = vmatprep.subr.mxu0 0.0
        %766 = vmatpush1.msra.mxu0 0.0
        %767 = vmatprep.subr.mxu0 0.0
        %768 = vmatpush1.msra.mxu0 0.0
        %769 = vmatprep.subr.mxu0 0.0
        %770 = vmatpush1.msra.mxu0 0.0
        %771 = vmatprep.subr.mxu0 0.0
        %772 = vmatpush1.msra.mxu0 0.0
        %773 = vmatprep.subr.mxu0 0.0
        %774 = vmatpush1.msra.mxu0 0.0
        %775 = vmatprep.subr.mxu0 0.0
        %776 = vmatpush1.msra.mxu0 0.0
        %777 = vmatprep.subr.mxu0 0.0
        %778 = vmatpush1.msra.mxu0 0.0
        %779 = vmatprep.subr.mxu0 0.0
        %780 = vmatpush1.msra.mxu0 0.0
        %781 = vmatprep.subr.mxu0 0.0
        %782 = vmatpush1.msra.mxu0 0.0
        %783 = vmatprep.subr.mxu0 0.0
        %784 = vmatpush1.msra.mxu0 0.0
        %785 = vmatprep.subr.mxu0 0.0
        %786 = vmatpush1.msra.mxu0 0.0
        %787 = vmatprep.subr.mxu0 0.0
        %788 = vmatpush1.msra.mxu0 0.0
        %789 = vmatprep.subr.mxu0 0.0
        %790 = vmatpush1.msra.mxu0 0.0
        %791 = vmatprep.mubr.f32.mxu0 0.0
        %792 = vmatmul.mubr.f32.gmra.mrb[0].mxu0 %v725
        %v793 = vpop.f32.mrb[0].mxu0
        %v794 = vadd.f32 %v722, %v793
        %v795 = vpop.f32.mrb[0].mxu0
        %796 = vdwg.mxu0
        %v798 = vsel %vm588, %v712, 0
        %800 = vmatprep.subr.mxu0 0.0
        %801 = vmatpush1.msra.mxu0 %v713
        %802 = vmatprep.subr.mxu0 0.0
        %803 = vmatpush1.msra.mxu0 %v714
        %804 = vmatprep.subr.mxu0 0.0
        %805 = vmatpush1.msra.mxu0 %v715
        %806 = vmatprep.subr.mxu0 0.0
        %807 = vmatpush1.msra.mxu0 %v716
        %808 = vmatprep.subr.mxu0 0.0
        %809 = vmatpush1.msra.mxu0 0.0
        %810 = vmatprep.subr.mxu0 0.0
        %811 = vmatpush1.msra.mxu0 0.0
        %812 = vmatprep.subr.mxu0 0.0
        %813 = vmatpush1.msra.mxu0 0.0
        %814 = vmatprep.subr.mxu0 0.0
        %815 = vmatpush1.msra.mxu0 0.0
        %816 = vmatprep.subr.mxu0 0.0
        %817 = vmatpush1.msra.mxu0 0.0
        %818 = vmatprep.subr.mxu0 0.0
        %819 = vmatpush1.msra.mxu0 0.0
        %820 = vmatprep.subr.mxu0 0.0
        %821 = vmatpush1.msra.mxu0 0.0
        %822 = vmatprep.subr.mxu0 0.0
        %823 = vmatpush1.msra.mxu0 0.0
        %824 = vmatprep.subr.mxu0 0.0
        %825 = vmatpush1.msra.mxu0 0.0
        %826 = vmatprep.subr.mxu0 0.0
        %827 = vmatpush1.msra.mxu0 0.0
        %828 = vmatprep.subr.mxu0 0.0
        %829 = vmatpush1.msra.mxu0 0.0
        %830 = vmatprep.subr.mxu0 0.0
        %831 = vmatpush1.msra.mxu0 0.0
        %832 = vmatprep.subr.mxu0 0.0
        %833 = vmatpush1.msra.mxu0 0.0
        %834 = vmatprep.subr.mxu0 0.0
        %835 = vmatpush1.msra.mxu0 0.0
        %836 = vmatprep.subr.mxu0 0.0
        %837 = vmatpush1.msra.mxu0 0.0
        %838 = vmatprep.subr.mxu0 0.0
        %839 = vmatpush1.msra.mxu0 0.0
        %840 = vmatprep.subr.mxu0 0.0
        %841 = vmatpush1.msra.mxu0 0.0
        %842 = vmatprep.subr.mxu0 0.0
        %843 = vmatpush1.msra.mxu0 0.0
        %844 = vmatprep.subr.mxu0 0.0
        %845 = vmatpush1.msra.mxu0 0.0
        %846 = vmatprep.subr.mxu0 0.0
        %847 = vmatpush1.msra.mxu0 0.0
        %848 = vmatprep.subr.mxu0 0.0
        %849 = vmatpush1.msra.mxu0 0.0
        %850 = vmatprep.subr.mxu0 0.0
        %851 = vmatpush1.msra.mxu0 0.0
        %852 = vmatprep.subr.mxu0 0.0
        %853 = vmatpush1.msra.mxu0 0.0
        %854 = vmatprep.subr.mxu0 0.0
        %855 = vmatpush1.msra.mxu0 0.0
        %856 = vmatprep.subr.mxu0 0.0
        %857 = vmatpush1.msra.mxu0 0.0
        %858 = vmatprep.subr.mxu0 0.0
        %859 = vmatpush1.msra.mxu0 0.0
        %860 = vmatprep.subr.mxu0 0.0
        %861 = vmatpush1.msra.mxu0 0.0
        %862 = vmatprep.subr.mxu0 0.0
        %863 = vmatpush1.msra.mxu0 0.0
        %864 = vmatprep.mubr.f32.mxu0 0.0
        %865 = vmatmul.mubr.f32.gmra.mrb[0].mxu0 %v798
        %v866 = vpop.f32.mrb[0].mxu0
        %v867 = vadd.f32 %v717, %v866
        %v868 = vpop.f32.mrb[0].mxu0
        %869 = vdwg.mxu0
        %v870 = vmul.f32 %v794, 0.35355338
        %v871 = vlaneseq
        %v872 = vshrl.u32 %v871, 7
        %v873 = vlaneseq
        %v874 = vand.u32 %v873, 127
        %vm875 = vcmp.le.s32.totalorder %v874, %v872
        %v876 = vsel %vm875, 0.0, -1e+30
        %878 = vrot.lane.b32.xlu0 %v794, 96
        %v879 = vpop.permute.xlu0 %878
        %vm880 = vcmask 64512
        %v882 = vsel %vm880, %v870, 0
        %v884 = vsel %vm880, %v879, 0
        %886 = vmatprep.subr.mxu0 0.0
        %887 = vmatpush1.xpose.msra.mxu0 %v884
        %888 = vmatprep.subr.mxu0 0.0
        %889 = vmatpush1.xpose.msra.mxu0 0.0
        %890 = vmatprep.subr.mxu0 0.0
        %891 = vmatpush1.xpose.msra.mxu0 0.0
        %892 = vmatprep.subr.mxu0 0.0
        %893 = vmatpush1.xpose.msra.mxu0 0.0
        %894 = vmatprep.subr.mxu0 0.0
        %895 = vmatpush1.xpose.msra.mxu0 0.0
        %896 = vmatprep.subr.mxu0 0.0
        %897 = vmatpush1.xpose.msra.mxu0 0.0
        %898 = vmatprep.subr.mxu0 0.0
        %899 = vmatpush1.xpose.msra.mxu0 0.0
        %900 = vmatprep.subr.mxu0 0.0
        %901 = vmatpush1.xpose.msra.mxu0 0.0
        %902 = vmatprep.subr.mxu0 0.0
        %903 = vmatpush1.xpose.msra.mxu0 0.0
        %904 = vmatprep.subr.mxu0 0.0
        %905 = vmatpush1.xpose.msra.mxu0 0.0
        %906 = vmatprep.subr.mxu0 0.0
        %907 = vmatpush1.xpose.msra.mxu0 0.0
        %908 = vmatprep.subr.mxu0 0.0
        %909 = vmatpush1.xpose.msra.mxu0 0.0
        %910 = vmatprep.subr.mxu0 0.0
        %911 = vmatpush1.xpose.msra.mxu0 0.0
        %912 = vmatprep.subr.mxu0 0.0
        %913 = vmatpush1.xpose.msra.mxu0 0.0
        %914 = vmatprep.subr.mxu0 0.0
        %915 = vmatpush1.xpose.msra.mxu0 0.0
        %916 = vmatprep.subr.mxu0 0.0
        %917 = vmatpush1.xpose.msra.mxu0 0.0
        %918 = vmatprep.subr.mxu0 0.0
        %919 = vmatpush1.xpose.msra.mxu0 0.0
        %920 = vmatprep.subr.mxu0 0.0
        %921 = vmatpush1.xpose.msra.mxu0 0.0
        %922 = vmatprep.subr.mxu0 0.0
        %923 = vmatpush1.xpose.msra.mxu0 0.0
        %924 = vmatprep.subr.mxu0 0.0
        %925 = vmatpush1.xpose.msra.mxu0 0.0
        %926 = vmatprep.subr.mxu0 0.0
        %927 = vmatpush1.xpose.msra.mxu0 0.0
        %928 = vmatprep.subr.mxu0 0.0
        %929 = vmatpush1.xpose.msra.mxu0 0.0
        %930 = vmatprep.subr.mxu0 0.0
        %931 = vmatpush1.xpose.msra.mxu0 0.0
        %932 = vmatprep.subr.mxu0 0.0
        %933 = vmatpush1.xpose.msra.mxu0 0.0
        %934 = vmatprep.subr.mxu0 0.0
        %935 = vmatpush1.xpose.msra.mxu0 0.0
        %936 = vmatprep.subr.mxu0 0.0
        %937 = vmatpush1.xpose.msra.mxu0 0.0
        %938 = vmatprep.subr.mxu0 0.0
        %939 = vmatpush1.xpose.msra.mxu0 0.0
        %940 = vmatprep.subr.mxu0 0.0
        %941 = vmatpush1.xpose.msra.mxu0 0.0
        %942 = vmatprep.subr.mxu0 0.0
        %943 = vmatpush1.xpose.msra.mxu0 0.0
        %944 = vmatprep.subr.mxu0 0.0
        %945 = vmatpush1.xpose.msra.mxu0 0.0
        %946 = vmatprep.subr.mxu0 0.0
        %947 = vmatpush1.xpose.msra.mxu0 0.0
        %948 = vmatprep.subr.mxu0 0.0
        %949 = vmatpush1.xpose.msra.mxu0 0.0
        %950 = vmatprep.mubr.f32.mxu0 0.0
        %951 = vmatmul.mubr.f32.gmra.mrb[0].mxu0 %v882
        %v952 = vpop.f32.mrb[0].mxu0
        %v953 = vadd.f32 %v876, %v952
        %v954 = vpop.f32.mrb[0].mxu0
        %955 = vdwg.mxu0
        %v956 = vlaneseq
        %v957 = vshrl.u32 %v956, 7
        %v958 = vsub.s32 0, %v957
        %v959 = vrot.slane %v867, %v958
        %961 = vrot.lane.b32.xlu0 %v959, 96
        %v962 = vpop.permute.xlu0 %961
        %v964 = vmul.f32 %v870, %v962
        %v965 = vsel %vm880, %v964, 0.0
        %966 = vadd.xlane.f32.xlu0 %v965
        %v967 = vpop.xlane.xlu0 %966
        %v968 = vsel %vm880, %v953, -inf
        %969 = vmax.xlane.f32.xlu0 %v968
        %v970 = vpop.xlane.xlu0 %969
        %v971 = vmax.f32 %v970, %v967
        %v972 = vsub.f32 %v953, %v971
        %v973 = vmul.f32 %v972, 1.442695
        %v974 = vpow.pop %v973
        %v975 = vsub.f32 %v967, %v971
        %v976 = vmul.f32 %v975, 1.442695
        %v977 = vpow.pop %v976
        %v978 = vsel %vm880, %v974, 0.0
        %979 = vadd.xlane.f32.xlu0 %v978
        %v980 = vpop.xlane.xlu0 %979
        %v981 = vadd.f32 %v980, %v977
        %v982 = vrcp.pop %v981
        %v983 = vmul.f32 %v981, %v982
        %v984 = vsub.f32 2.0, %v983
        %v985 = vmul.f32 %v982, %v984
        %v986 = vmul.f32 %v977, %v959
        %987 = vrot.lane.b32.xlu0 %v794, 64
        %v988 = vpop.permute.xlu0 %987
        %991 = vrot.lane.b32.xlu0 %v986, 64
        %v992 = vpop.permute.xlu0 %991
        %v995 = vsel %vm880, %v974, 0
        %997 = vmatprep.subr.mxu0 0.0
        %998 = vmatpush1.msra.mxu0 %v988
        %999 = vmatprep.subr.mxu0 0.0
        %1000 = vmatpush1.msra.mxu0 0.0
        %1001 = vmatprep.subr.mxu0 0.0
        %1002 = vmatpush1.msra.mxu0 0.0
        %1003 = vmatprep.subr.mxu0 0.0
        %1004 = vmatpush1.msra.mxu0 0.0
        %1005 = vmatprep.subr.mxu0 0.0
        %1006 = vmatpush1.msra.mxu0 0.0
        %1007 = vmatprep.subr.mxu0 0.0
        %1008 = vmatpush1.msra.mxu0 0.0
        %1009 = vmatprep.subr.mxu0 0.0
        %1010 = vmatpush1.msra.mxu0 0.0
        %1011 = vmatprep.subr.mxu0 0.0
        %1012 = vmatpush1.msra.mxu0 0.0
        %1013 = vmatprep.subr.mxu0 0.0
        %1014 = vmatpush1.msra.mxu0 0.0
        %1015 = vmatprep.subr.mxu0 0.0
        %1016 = vmatpush1.msra.mxu0 0.0
        %1017 = vmatprep.subr.mxu0 0.0
        %1018 = vmatpush1.msra.mxu0 0.0
        %1019 = vmatprep.subr.mxu0 0.0
        %1020 = vmatpush1.msra.mxu0 0.0
        %1021 = vmatprep.subr.mxu0 0.0
        %1022 = vmatpush1.msra.mxu0 0.0
        %1023 = vmatprep.subr.mxu0 0.0
        %1024 = vmatpush1.msra.mxu0 0.0
        %1025 = vmatprep.subr.mxu0 0.0
        %1026 = vmatpush1.msra.mxu0 0.0
        %1027 = vmatprep.subr.mxu0 0.0
        %1028 = vmatpush1.msra.mxu0 0.0
        %1029 = vmatprep.subr.mxu0 0.0
        %1030 = vmatpush1.msra.mxu0 0.0
        %1031 = vmatprep.subr.mxu0 0.0
        %1032 = vmatpush1.msra.mxu0 0.0
        %1033 = vmatprep.subr.mxu0 0.0
        %1034 = vmatpush1.msra.mxu0 0.0
        %1035 = vmatprep.subr.mxu0 0.0
        %1036 = vmatpush1.msra.mxu0 0.0
        %1037 = vmatprep.subr.mxu0 0.0
        %1038 = vmatpush1.msra.mxu0 0.0
        %1039 = vmatprep.subr.mxu0 0.0
        %1040 = vmatpush1.msra.mxu0 0.0
        %1041 = vmatprep.subr.mxu0 0.0
        %1042 = vmatpush1.msra.mxu0 0.0
        %1043 = vmatprep.subr.mxu0 0.0
        %1044 = vmatpush1.msra.mxu0 0.0
        %1045 = vmatprep.subr.mxu0 0.0
        %1046 = vmatpush1.msra.mxu0 0.0
        %1047 = vmatprep.subr.mxu0 0.0
        %1048 = vmatpush1.msra.mxu0 0.0
        %1049 = vmatprep.subr.mxu0 0.0
        %1050 = vmatpush1.msra.mxu0 0.0
        %1051 = vmatprep.subr.mxu0 0.0
        %1052 = vmatpush1.msra.mxu0 0.0
        %1053 = vmatprep.subr.mxu0 0.0
        %1054 = vmatpush1.msra.mxu0 0.0
        %1055 = vmatprep.subr.mxu0 0.0
        %1056 = vmatpush1.msra.mxu0 0.0
        %1057 = vmatprep.subr.mxu0 0.0
        %1058 = vmatpush1.msra.mxu0 0.0
        %1059 = vmatprep.subr.mxu0 0.0
        %1060 = vmatpush1.msra.mxu0 0.0
        %1061 = vmatprep.mubr.f32.mxu0 0.0
        %1062 = vmatmul.mubr.f32.gmra.mrb[0].mxu0 %v995
        %v1063 = vpop.f32.mrb[0].mxu0
        %v1064 = vadd.f32 %v992, %v1063
        %v1065 = vpop.f32.mrb[0].mxu0
        %1066 = vdwg.mxu0
        %v1067 = vmul.f32 %v1064, %v985
        %v1068 = vld [vmem:[%s10] sm:$0xff]
        %1069 = vrot.lane.b32.xlu0 %v870, 120
        %v1070 = vpop.permute.xlu0 %1069
        %1071 = vrot.lane.b32.xlu0 %v794, 88
        %v1072 = vpop.permute.xlu0 %1071
        %v1073 = vsel %vm880, %v1070, 0
        %v1075 = vsel %vm880, %v1072, 0
        %1077 = vmatprep.subr.mxu0 0.0
        %1078 = vmatpush1.xpose.msra.mxu0 %v1075
        %1079 = vmatprep.subr.mxu0 0.0
        %1080 = vmatpush1.xpose.msra.mxu0 0.0
        %1081 = vmatprep.subr.mxu0 0.0
        %1082 = vmatpush1.xpose.msra.mxu0 0.0
        %1083 = vmatprep.subr.mxu0 0.0
        %1084 = vmatpush1.xpose.msra.mxu0 0.0
        %1085 = vmatprep.subr.mxu0 0.0
        %1086 = vmatpush1.xpose.msra.mxu0 0.0
        %1087 = vmatprep.subr.mxu0 0.0
        %1088 = vmatpush1.xpose.msra.mxu0 0.0
        %1089 = vmatprep.subr.mxu0 0.0
        %1090 = vmatpush1.xpose.msra.mxu0 0.0
        %1091 = vmatprep.subr.mxu0 0.0
        %1092 = vmatpush1.xpose.msra.mxu0 0.0
        %1093 = vmatprep.subr.mxu0 0.0
        %1094 = vmatpush1.xpose.msra.mxu0 0.0
        %1095 = vmatprep.subr.mxu0 0.0
        %1096 = vmatpush1.xpose.msra.mxu0 0.0
        %1097 = vmatprep.subr.mxu0 0.0
        %1098 = vmatpush1.xpose.msra.mxu0 0.0
        %1099 = vmatprep.subr.mxu0 0.0
        %1100 = vmatpush1.xpose.msra.mxu0 0.0
        %1101 = vmatprep.subr.mxu0 0.0
        %1102 = vmatpush1.xpose.msra.mxu0 0.0
        %1103 = vmatprep.subr.mxu0 0.0
        %1104 = vmatpush1.xpose.msra.mxu0 0.0
        %1105 = vmatprep.subr.mxu0 0.0
        %1106 = vmatpush1.xpose.msra.mxu0 0.0
        %1107 = vmatprep.subr.mxu0 0.0
        %1108 = vmatpush1.xpose.msra.mxu0 0.0
        %1109 = vmatprep.subr.mxu0 0.0
        %1110 = vmatpush1.xpose.msra.mxu0 0.0
        %1111 = vmatprep.subr.mxu0 0.0
        %1112 = vmatpush1.xpose.msra.mxu0 0.0
        %1113 = vmatprep.subr.mxu0 0.0
        %1114 = vmatpush1.xpose.msra.mxu0 0.0
        %1115 = vmatprep.subr.mxu0 0.0
        %1116 = vmatpush1.xpose.msra.mxu0 0.0
        %1117 = vmatprep.subr.mxu0 0.0
        %1118 = vmatpush1.xpose.msra.mxu0 0.0
        %1119 = vmatprep.subr.mxu0 0.0
        %1120 = vmatpush1.xpose.msra.mxu0 0.0
        %1121 = vmatprep.subr.mxu0 0.0
        %1122 = vmatpush1.xpose.msra.mxu0 0.0
        %1123 = vmatprep.subr.mxu0 0.0
        %1124 = vmatpush1.xpose.msra.mxu0 0.0
        %1125 = vmatprep.subr.mxu0 0.0
        %1126 = vmatpush1.xpose.msra.mxu0 0.0
        %1127 = vmatprep.subr.mxu0 0.0
        %1128 = vmatpush1.xpose.msra.mxu0 0.0
        %1129 = vmatprep.subr.mxu0 0.0
        %1130 = vmatpush1.xpose.msra.mxu0 0.0
        %1131 = vmatprep.subr.mxu0 0.0
        %1132 = vmatpush1.xpose.msra.mxu0 0.0
        %1133 = vmatprep.subr.mxu0 0.0
        %1134 = vmatpush1.xpose.msra.mxu0 0.0
        %1135 = vmatprep.subr.mxu0 0.0
        %1136 = vmatpush1.xpose.msra.mxu0 0.0
        %1137 = vmatprep.subr.mxu0 0.0
        %1138 = vmatpush1.xpose.msra.mxu0 0.0
        %1139 = vmatprep.subr.mxu0 0.0
        %1140 = vmatpush1.xpose.msra.mxu0 0.0
        %1141 = vmatprep.mubr.f32.mxu0 0.0
        %1142 = vmatmul.mubr.f32.gmra.mrb[0].mxu0 %v1073
        %v1143 = vpop.f32.mrb[0].mxu0
        %v1144 = vadd.f32 %v876, %v1143
        %v1145 = vpop.f32.mrb[0].mxu0
        %1146 = vdwg.mxu0
        %1148 = vrot.lane.b32.xlu0 %v964, 120
        %v1149 = vpop.permute.xlu0 %1148
        %v1151 = vsel %vm880, %v1149, 0.0
        %1152 = vadd.xlane.f32.xlu0 %v1151
        %v1153 = vpop.xlane.xlu0 %1152
        %v1154 = vsel %vm880, %v1144, -inf
        %1155 = vmax.xlane.f32.xlu0 %v1154
        %v1156 = vpop.xlane.xlu0 %1155
        %v1157 = vmax.f32 %v1156, %v1153
        %v1158 = vsub.f32 %v1144, %v1157
        %v1159 = vmul.f32 %v1158, 1.442695
        %v1160 = vpow.pop %v1159
        %v1161 = vsub.f32 %v1153, %v1157
        %v1162 = vmul.f32 %v1161, 1.442695
        %v1163 = vpow.pop %v1162
        %v1164 = vsel %vm880, %v1160, 0.0
        %1165 = vadd.xlane.f32.xlu0 %v1164
        %v1166 = vpop.xlane.xlu0 %1165
        %v1167 = vadd.f32 %v1166, %v1163
        %v1168 = vrcp.pop %v1167
        %v1169 = vmul.f32 %v1167, %v1168
        %v1170 = vsub.f32 2.0, %v1169
        %v1171 = vmul.f32 %v1168, %v1170
        %v1172 = vmul.f32 %v1163, %v959
        %1173 = vrot.lane.b32.xlu0 %v794, 56
        %v1174 = vpop.permute.xlu0 %1173
        %1177 = vrot.lane.b32.xlu0 %v1172, 56
        %v1178 = vpop.permute.xlu0 %1177
        %v1181 = vsel %vm880, %v1160, 0
        %1183 = vmatprep.subr.mxu0 0.0
        %1184 = vmatpush1.msra.mxu0 %v1174
        %1185 = vmatprep.subr.mxu0 0.0
        %1186 = vmatpush1.msra.mxu0 0.0
        %1187 = vmatprep.subr.mxu0 0.0
        %1188 = vmatpush1.msra.mxu0 0.0
        %1189 = vmatprep.subr.mxu0 0.0
        %1190 = vmatpush1.msra.mxu0 0.0
        %1191 = vmatprep.subr.mxu0 0.0
        %1192 = vmatpush1.msra.mxu0 0.0
        %1193 = vmatprep.subr.mxu0 0.0
        %1194 = vmatpush1.msra.mxu0 0.0
        %1195 = vmatprep.subr.mxu0 0.0
        %1196 = vmatpush1.msra.mxu0 0.0
        %1197 = vmatprep.subr.mxu0 0.0
        %1198 = vmatpush1.msra.mxu0 0.0
        %1199 = vmatprep.subr.mxu0 0.0
        %1200 = vmatpush1.msra.mxu0 0.0
        %1201 = vmatprep.subr.mxu0 0.0
        %1202 = vmatpush1.msra.mxu0 0.0
        %1203 = vmatprep.subr.mxu0 0.0
        %1204 = vmatpush1.msra.mxu0 0.0
        %1205 = vmatprep.subr.mxu0 0.0
        %1206 = vmatpush1.msra.mxu0 0.0
        %1207 = vmatprep.subr.mxu0 0.0
        %1208 = vmatpush1.msra.mxu0 0.0
        %1209 = vmatprep.subr.mxu0 0.0
        %1210 = vmatpush1.msra.mxu0 0.0
        %1211 = vmatprep.subr.mxu0 0.0
        %1212 = vmatpush1.msra.mxu0 0.0
        %1213 = vmatprep.subr.mxu0 0.0
        %1214 = vmatpush1.msra.mxu0 0.0
        %1215 = vmatprep.subr.mxu0 0.0
        %1216 = vmatpush1.msra.mxu0 0.0
        %1217 = vmatprep.subr.mxu0 0.0
        %1218 = vmatpush1.msra.mxu0 0.0
        %1219 = vmatprep.subr.mxu0 0.0
        %1220 = vmatpush1.msra.mxu0 0.0
        %1221 = vmatprep.subr.mxu0 0.0
        %1222 = vmatpush1.msra.mxu0 0.0
        %1223 = vmatprep.subr.mxu0 0.0
        %1224 = vmatpush1.msra.mxu0 0.0
        %1225 = vmatprep.subr.mxu0 0.0
        %1226 = vmatpush1.msra.mxu0 0.0
        %1227 = vmatprep.subr.mxu0 0.0
        %1228 = vmatpush1.msra.mxu0 0.0
        %1229 = vmatprep.subr.mxu0 0.0
        %1230 = vmatpush1.msra.mxu0 0.0
        %1231 = vmatprep.subr.mxu0 0.0
        %1232 = vmatpush1.msra.mxu0 0.0
        %1233 = vmatprep.subr.mxu0 0.0
        %1234 = vmatpush1.msra.mxu0 0.0
        %1235 = vmatprep.subr.mxu0 0.0
        %1236 = vmatpush1.msra.mxu0 0.0
        %1237 = vmatprep.subr.mxu0 0.0
        %1238 = vmatpush1.msra.mxu0 0.0
        %1239 = vmatprep.subr.mxu0 0.0
        %1240 = vmatpush1.msra.mxu0 0.0
        %1241 = vmatprep.subr.mxu0 0.0
        %1242 = vmatpush1.msra.mxu0 0.0
        %1243 = vmatprep.subr.mxu0 0.0
        %1244 = vmatpush1.msra.mxu0 0.0
        %1245 = vmatprep.subr.mxu0 0.0
        %1246 = vmatpush1.msra.mxu0 0.0
        %1247 = vmatprep.mubr.f32.mxu0 0.0
        %1248 = vmatmul.mubr.f32.gmra.mrb[0].mxu0 %v1181
        %v1249 = vpop.f32.mrb[0].mxu0
        %v1250 = vadd.f32 %v1178, %v1249
        %v1251 = vpop.f32.mrb[0].mxu0
        %1252 = vdwg.mxu0
        %v1253 = vmul.f32 %v1250, %v1171
        %v1254 = vld [vmem:[%s10 + $0x8] sm:$0xff]
        %v1256 = vsel %vm880, %v1253, 0
        %1258 = vmatprep.subr.mxu0 0.0
        %1259 = vmatpush1.msra.mxu0 %v1254
        %1260 = vmatprep.subr.mxu0 0.0
        %1261 = vmatpush1.msra.mxu0 0.0
        %1262 = vmatprep.subr.mxu0 0.0
        %1263 = vmatpush1.msra.mxu0 0.0
        %1264 = vmatprep.subr.mxu0 0.0
        %1265 = vmatpush1.msra.mxu0 0.0
        %1266 = vmatprep.subr.mxu0 0.0
        %1267 = vmatpush1.msra.mxu0 0.0
        %1268 = vmatprep.subr.mxu0 0.0
        %1269 = vmatpush1.msra.mxu0 0.0
        %1270 = vmatprep.subr.mxu0 0.0
        %1271 = vmatpush1.msra.mxu0 0.0
        %1272 = vmatprep.subr.mxu0 0.0
        %1273 = vmatpush1.msra.mxu0 0.0
        %1274 = vmatprep.subr.mxu0 0.0
        %1275 = vmatpush1.msra.mxu0 0.0
        %1276 = vmatprep.subr.mxu0 0.0
        %1277 = vmatpush1.msra.mxu0 0.0
        %1278 = vmatprep.subr.mxu0 0.0
        %1279 = vmatpush1.msra.mxu0 0.0
        %1280 = vmatprep.subr.mxu0 0.0
        %1281 = vmatpush1.msra.mxu0 0.0
        %1282 = vmatprep.subr.mxu0 0.0
        %1283 = vmatpush1.msra.mxu0 0.0
        %1284 = vmatprep.subr.mxu0 0.0
        %1285 = vmatpush1.msra.mxu0 0.0
        %1286 = vmatprep.subr.mxu0 0.0
        %1287 = vmatpush1.msra.mxu0 0.0
        %1288 = vmatprep.subr.mxu0 0.0
        %1289 = vmatpush1.msra.mxu0 0.0
        %1290 = vmatprep.subr.mxu0 0.0
        %1291 = vmatpush1.msra.mxu0 0.0
        %1292 = vmatprep.subr.mxu0 0.0
        %1293 = vmatpush1.msra.mxu0 0.0
        %1294 = vmatprep.subr.mxu0 0.0
        %1295 = vmatpush1.msra.mxu0 0.0
        %1296 = vmatprep.subr.mxu0 0.0
        %1297 = vmatpush1.msra.mxu0 0.0
        %1298 = vmatprep.subr.mxu0 0.0
        %1299 = vmatpush1.msra.mxu0 0.0
        %1300 = vmatprep.subr.mxu0 0.0
        %1301 = vmatpush1.msra.mxu0 0.0
        %1302 = vmatprep.subr.mxu0 0.0
        %1303 = vmatpush1.msra.mxu0 0.0
        %1304 = vmatprep.subr.mxu0 0.0
        %1305 = vmatpush1.msra.mxu0 0.0
        %1306 = vmatprep.subr.mxu0 0.0
        %1307 = vmatpush1.msra.mxu0 0.0
        %1308 = vmatprep.subr.mxu0 0.0
        %1309 = vmatpush1.msra.mxu0 0.0
        %1310 = vmatprep.subr.mxu0 0.0
        %1311 = vmatpush1.msra.mxu0 0.0
        %1312 = vmatprep.subr.mxu0 0.0
        %1313 = vmatpush1.msra.mxu0 0.0
        %1314 = vmatprep.subr.mxu0 0.0
        %1315 = vmatpush1.msra.mxu0 0.0
        %1316 = vmatprep.subr.mxu0 0.0
        %1317 = vmatpush1.msra.mxu0 0.0
        %1318 = vmatprep.subr.mxu0 0.0
        %1319 = vmatpush1.msra.mxu0 0.0
        %1320 = vmatprep.subr.mxu0 0.0
        %1321 = vmatpush1.msra.mxu0 0.0
        %1322 = vmatprep.mubr.f32.mxu0 0.0
        %1323 = vmatmul.mubr.f32.gmra.mrb[0].mxu0 %v1256
        %v1324 = vpop.f32.mrb[0].mxu0
        %v1325 = vadd.f32 0.0, %v1324
        %v1326 = vpop.f32.mrb[0].mxu0
        %1327 = vdwg.mxu0
        %v1329 = vsel %vm880, %v1067, 0
        %1331 = vmatprep.subr.mxu0 0.0
        %1332 = vmatpush1.msra.mxu0 %v1068
        %1333 = vmatprep.subr.mxu0 0.0
        %1334 = vmatpush1.msra.mxu0 0.0
        %1335 = vmatprep.subr.mxu0 0.0
        %1336 = vmatpush1.msra.mxu0 0.0
        %1337 = vmatprep.subr.mxu0 0.0
        %1338 = vmatpush1.msra.mxu0 0.0
        %1339 = vmatprep.subr.mxu0 0.0
        %1340 = vmatpush1.msra.mxu0 0.0
        %1341 = vmatprep.subr.mxu0 0.0
        %1342 = vmatpush1.msra.mxu0 0.0
        %1343 = vmatprep.subr.mxu0 0.0
        %1344 = vmatpush1.msra.mxu0 0.0
        %1345 = vmatprep.subr.mxu0 0.0
        %1346 = vmatpush1.msra.mxu0 0.0
        %1347 = vmatprep.subr.mxu0 0.0
        %1348 = vmatpush1.msra.mxu0 0.0
        %1349 = vmatprep.subr.mxu0 0.0
        %1350 = vmatpush1.msra.mxu0 0.0
        %1351 = vmatprep.subr.mxu0 0.0
        %1352 = vmatpush1.msra.mxu0 0.0
        %1353 = vmatprep.subr.mxu0 0.0
        %1354 = vmatpush1.msra.mxu0 0.0
        %1355 = vmatprep.subr.mxu0 0.0
        %1356 = vmatpush1.msra.mxu0 0.0
        %1357 = vmatprep.subr.mxu0 0.0
        %1358 = vmatpush1.msra.mxu0 0.0
        %1359 = vmatprep.subr.mxu0 0.0
        %1360 = vmatpush1.msra.mxu0 0.0
        %1361 = vmatprep.subr.mxu0 0.0
        %1362 = vmatpush1.msra.mxu0 0.0
        %1363 = vmatprep.subr.mxu0 0.0
        %1364 = vmatpush1.msra.mxu0 0.0
        %1365 = vmatprep.subr.mxu0 0.0
        %1366 = vmatpush1.msra.mxu0 0.0
        %1367 = vmatprep.subr.mxu0 0.0
        %1368 = vmatpush1.msra.mxu0 0.0
        %1369 = vmatprep.subr.mxu0 0.0
        %1370 = vmatpush1.msra.mxu0 0.0
        %1371 = vmatprep.subr.mxu0 0.0
        %1372 = vmatpush1.msra.mxu0 0.0
        %1373 = vmatprep.subr.mxu0 0.0
        %1374 = vmatpush1.msra.mxu0 0.0
        %1375 = vmatprep.subr.mxu0 0.0
        %1376 = vmatpush1.msra.mxu0 0.0
        %1377 = vmatprep.subr.mxu0 0.0
        %1378 = vmatpush1.msra.mxu0 0.0
        %1379 = vmatprep.subr.mxu0 0.0
        %1380 = vmatpush1.msra.mxu0 0.0
        %1381 = vmatprep.subr.mxu0 0.0
        %1382 = vmatpush1.msra.mxu0 0.0
        %1383 = vmatprep.subr.mxu0 0.0
        %1384 = vmatpush1.msra.mxu0 0.0
        %1385 = vmatprep.subr.mxu0 0.0
        %1386 = vmatpush1.msra.mxu0 0.0
        %1387 = vmatprep.subr.mxu0 0.0
        %1388 = vmatpush1.msra.mxu0 0.0
        %1389 = vmatprep.subr.mxu0 0.0
        %1390 = vmatpush1.msra.mxu0 0.0
        %1391 = vmatprep.subr.mxu0 0.0
        %1392 = vmatpush1.msra.mxu0 0.0
        %1393 = vmatprep.subr.mxu0 0.0
        %1394 = vmatpush1.msra.mxu0 0.0
        %1395 = vmatprep.mubr.f32.mxu0 0.0
        %1396 = vmatmul.mubr.f32.gmra.mrb[0].mxu0 %v1329
        %v1397 = vpop.f32.mrb[0].mxu0
        %v1398 = vadd.f32 %v1325, %v1397
        %v1399 = vpop.f32.mrb[0].mxu0
        %1400 = vdwg.mxu0
        %1401 = vrot.lane.b32.xlu0 %v870, 112
        %v1402 = vpop.permute.xlu0 %1401
        %1403 = vrot.lane.b32.xlu0 %v794, 80
        %v1404 = vpop.permute.xlu0 %1403
        %v1405 = vsel %vm880, %v1402, 0
        %v1407 = vsel %vm880, %v1404, 0
        %1409 = vmatprep.subr.mxu0 0.0
        %1410 = vmatpush1.xpose.msra.mxu0 %v1407
        %1411 = vmatprep.subr.mxu0 0.0
        %1412 = vmatpush1.xpose.msra.mxu0 0.0
        %1413 = vmatprep.subr.mxu0 0.0
        %1414 = vmatpush1.xpose.msra.mxu0 0.0
        %1415 = vmatprep.subr.mxu0 0.0
        %1416 = vmatpush1.xpose.msra.mxu0 0.0
        %1417 = vmatprep.subr.mxu0 0.0
        %1418 = vmatpush1.xpose.msra.mxu0 0.0
        %1419 = vmatprep.subr.mxu0 0.0
        %1420 = vmatpush1.xpose.msra.mxu0 0.0
        %1421 = vmatprep.subr.mxu0 0.0
        %1422 = vmatpush1.xpose.msra.mxu0 0.0
        %1423 = vmatprep.subr.mxu0 0.0
        %1424 = vmatpush1.xpose.msra.mxu0 0.0
        %1425 = vmatprep.subr.mxu0 0.0
        %1426 = vmatpush1.xpose.msra.mxu0 0.0
        %1427 = vmatprep.subr.mxu0 0.0
        %1428 = vmatpush1.xpose.msra.mxu0 0.0
        %1429 = vmatprep.subr.mxu0 0.0
        %1430 = vmatpush1.xpose.msra.mxu0 0.0
        %1431 = vmatprep.subr.mxu0 0.0
        %1432 = vmatpush1.xpose.msra.mxu0 0.0
        %1433 = vmatprep.subr.mxu0 0.0
        %1434 = vmatpush1.xpose.msra.mxu0 0.0
        %1435 = vmatprep.subr.mxu0 0.0
        %1436 = vmatpush1.xpose.msra.mxu0 0.0
        %1437 = vmatprep.subr.mxu0 0.0
        %1438 = vmatpush1.xpose.msra.mxu0 0.0
        %1439 = vmatprep.subr.mxu0 0.0
        %1440 = vmatpush1.xpose.msra.mxu0 0.0
        %1441 = vmatprep.subr.mxu0 0.0
        %1442 = vmatpush1.xpose.msra.mxu0 0.0
        %1443 = vmatprep.subr.mxu0 0.0
        %1444 = vmatpush1.xpose.msra.mxu0 0.0
        %1445 = vmatprep.subr.mxu0 0.0
        %1446 = vmatpush1.xpose.msra.mxu0 0.0
        %1447 = vmatprep.subr.mxu0 0.0
        %1448 = vmatpush1.xpose.msra.mxu0 0.0
        %1449 = vmatprep.subr.mxu0 0.0
        %1450 = vmatpush1.xpose.msra.mxu0 0.0
        %1451 = vmatprep.subr.mxu0 0.0
        %1452 = vmatpush1.xpose.msra.mxu0 0.0
        %1453 = vmatprep.subr.mxu0 0.0
        %1454 = vmatpush1.xpose.msra.mxu0 0.0
        %1455 = vmatprep.subr.mxu0 0.0
        %1456 = vmatpush1.xpose.msra.mxu0 0.0
        %1457 = vmatprep.subr.mxu0 0.0
        %1458 = vmatpush1.xpose.msra.mxu0 0.0
        %1459 = vmatprep.subr.mxu0 0.0
        %1460 = vmatpush1.xpose.msra.mxu0 0.0
        %1461 = vmatprep.subr.mxu0 0.0
        %1462 = vmatpush1.xpose.msra.mxu0 0.0
        %1463 = vmatprep.subr.mxu0 0.0
        %1464 = vmatpush1.xpose.msra.mxu0 0.0
        %1465 = vmatprep.subr.mxu0 0.0
        %1466 = vmatpush1.xpose.msra.mxu0 0.0
        %1467 = vmatprep.subr.mxu0 0.0
        %1468 = vmatpush1.xpose.msra.mxu0 0.0
        %1469 = vmatprep.subr.mxu0 0.0
        %1470 = vmatpush1.xpose.msra.mxu0 0.0
        %1471 = vmatprep.subr.mxu0 0.0
        %1472 = vmatpush1.xpose.msra.mxu0 0.0
        %1473 = vmatprep.mubr.f32.mxu0 0.0
        %1474 = vmatmul.mubr.f32.gmra.mrb[0].mxu0 %v1405
        %v1475 = vpop.f32.mrb[0].mxu0
        %v1476 = vadd.f32 %v876, %v1475
        %v1477 = vpop.f32.mrb[0].mxu0
        %1478 = vdwg.mxu0
        %1479 = vrot.lane.b32.xlu0 %v964, 112
        %v1480 = vpop.permute.xlu0 %1479
        %v1482 = vsel %vm880, %v1480, 0.0
        %1483 = vadd.xlane.f32.xlu0 %v1482
        %v1484 = vpop.xlane.xlu0 %1483
        %v1485 = vsel %vm880, %v1476, -inf
        %1486 = vmax.xlane.f32.xlu0 %v1485
        %v1487 = vpop.xlane.xlu0 %1486
        %v1488 = vmax.f32 %v1487, %v1484
        %v1489 = vsub.f32 %v1476, %v1488
        %v1490 = vmul.f32 %v1489, 1.442695
        %v1491 = vpow.pop %v1490
        %v1492 = vsub.f32 %v1484, %v1488
        %v1493 = vmul.f32 %v1492, 1.442695
        %v1494 = vpow.pop %v1493
        %v1495 = vsel %vm880, %v1491, 0.0
        %1496 = vadd.xlane.f32.xlu0 %v1495
        %v1497 = vpop.xlane.xlu0 %1496
        %v1498 = vadd.f32 %v1497, %v1494
        %v1499 = vrcp.pop %v1498
        %v1500 = vmul.f32 %v1498, %v1499
        %v1501 = vsub.f32 2.0, %v1500
        %v1502 = vmul.f32 %v1499, %v1501
        %v1503 = vmul.f32 %v1494, %v959
        %1504 = vrot.lane.b32.xlu0 %v794, 48
        %v1505 = vpop.permute.xlu0 %1504
        %1508 = vrot.lane.b32.xlu0 %v1503, 48
        %v1509 = vpop.permute.xlu0 %1508
        %v1512 = vsel %vm880, %v1491, 0
        %1514 = vmatprep.subr.mxu0 0.0
        %1515 = vmatpush1.msra.mxu0 %v1505
        %1516 = vmatprep.subr.mxu0 0.0
        %1517 = vmatpush1.msra.mxu0 0.0
        %1518 = vmatprep.subr.mxu0 0.0
        %1519 = vmatpush1.msra.mxu0 0.0
        %1520 = vmatprep.subr.mxu0 0.0
        %1521 = vmatpush1.msra.mxu0 0.0
        %1522 = vmatprep.subr.mxu0 0.0
        %1523 = vmatpush1.msra.mxu0 0.0
        %1524 = vmatprep.subr.mxu0 0.0
        %1525 = vmatpush1.msra.mxu0 0.0
        %1526 = vmatprep.subr.mxu0 0.0
        %1527 = vmatpush1.msra.mxu0 0.0
        %1528 = vmatprep.subr.mxu0 0.0
        %1529 = vmatpush1.msra.mxu0 0.0
        %1530 = vmatprep.subr.mxu0 0.0
        %1531 = vmatpush1.msra.mxu0 0.0
        %1532 = vmatprep.subr.mxu0 0.0
        %1533 = vmatpush1.msra.mxu0 0.0
        %1534 = vmatprep.subr.mxu0 0.0
        %1535 = vmatpush1.msra.mxu0 0.0
        %1536 = vmatprep.subr.mxu0 0.0
        %1537 = vmatpush1.msra.mxu0 0.0
        %1538 = vmatprep.subr.mxu0 0.0
        %1539 = vmatpush1.msra.mxu0 0.0
        %1540 = vmatprep.subr.mxu0 0.0
        %1541 = vmatpush1.msra.mxu0 0.0
        %1542 = vmatprep.subr.mxu0 0.0
        %1543 = vmatpush1.msra.mxu0 0.0
        %1544 = vmatprep.subr.mxu0 0.0
        %1545 = vmatpush1.msra.mxu0 0.0
        %1546 = vmatprep.subr.mxu0 0.0
        %1547 = vmatpush1.msra.mxu0 0.0
        %1548 = vmatprep.subr.mxu0 0.0
        %1549 = vmatpush1.msra.mxu0 0.0
        %1550 = vmatprep.subr.mxu0 0.0
        %1551 = vmatpush1.msra.mxu0 0.0
        %1552 = vmatprep.subr.mxu0 0.0
        %1553 = vmatpush1.msra.mxu0 0.0
        %1554 = vmatprep.subr.mxu0 0.0
        %1555 = vmatpush1.msra.mxu0 0.0
        %1556 = vmatprep.subr.mxu0 0.0
        %1557 = vmatpush1.msra.mxu0 0.0
        %1558 = vmatprep.subr.mxu0 0.0
        %1559 = vmatpush1.msra.mxu0 0.0
        %1560 = vmatprep.subr.mxu0 0.0
        %1561 = vmatpush1.msra.mxu0 0.0
        %1562 = vmatprep.subr.mxu0 0.0
        %1563 = vmatpush1.msra.mxu0 0.0
        %1564 = vmatprep.subr.mxu0 0.0
        %1565 = vmatpush1.msra.mxu0 0.0
        %1566 = vmatprep.subr.mxu0 0.0
        %1567 = vmatpush1.msra.mxu0 0.0
        %1568 = vmatprep.subr.mxu0 0.0
        %1569 = vmatpush1.msra.mxu0 0.0
        %1570 = vmatprep.subr.mxu0 0.0
        %1571 = vmatpush1.msra.mxu0 0.0
        %1572 = vmatprep.subr.mxu0 0.0
        %1573 = vmatpush1.msra.mxu0 0.0
        %1574 = vmatprep.subr.mxu0 0.0
        %1575 = vmatpush1.msra.mxu0 0.0
        %1576 = vmatprep.subr.mxu0 0.0
        %1577 = vmatpush1.msra.mxu0 0.0
        %1578 = vmatprep.mubr.f32.mxu0 0.0
        %1579 = vmatmul.mubr.f32.gmra.mrb[0].mxu0 %v1512
        %v1580 = vpop.f32.mrb[0].mxu0
        %v1581 = vadd.f32 %v1509, %v1580
        %v1582 = vpop.f32.mrb[0].mxu0
        %1583 = vdwg.mxu0
        %v1584 = vmul.f32 %v1581, %v1502
        %v1585 = vld [vmem:[%s10 + $0x10] sm:$0xff]
        %v1587 = vsel %vm880, %v1584, 0
        %1589 = vmatprep.subr.mxu0 0.0
        %1590 = vmatpush1.msra.mxu0 %v1585
        %1591 = vmatprep.subr.mxu0 0.0
        %1592 = vmatpush1.msra.mxu0 0.0
        %1593 = vmatprep.subr.mxu0 0.0
        %1594 = vmatpush1.msra.mxu0 0.0
        %1595 = vmatprep.subr.mxu0 0.0
        %1596 = vmatpush1.msra.mxu0 0.0
        %1597 = vmatprep.subr.mxu0 0.0
        %1598 = vmatpush1.msra.mxu0 0.0
        %1599 = vmatprep.subr.mxu0 0.0
        %1600 = vmatpush1.msra.mxu0 0.0
        %1601 = vmatprep.subr.mxu0 0.0
        %1602 = vmatpush1.msra.mxu0 0.0
        %1603 = vmatprep.subr.mxu0 0.0
        %1604 = vmatpush1.msra.mxu0 0.0
        %1605 = vmatprep.subr.mxu0 0.0
        %1606 = vmatpush1.msra.mxu0 0.0
        %1607 = vmatprep.subr.mxu0 0.0
        %1608 = vmatpush1.msra.mxu0 0.0
        %1609 = vmatprep.subr.mxu0 0.0
        %1610 = vmatpush1.msra.mxu0 0.0
        %1611 = vmatprep.subr.mxu0 0.0
        %1612 = vmatpush1.msra.mxu0 0.0
        %1613 = vmatprep.subr.mxu0 0.0
        %1614 = vmatpush1.msra.mxu0 0.0
        %1615 = vmatprep.subr.mxu0 0.0
        %1616 = vmatpush1.msra.mxu0 0.0
        %1617 = vmatprep.subr.mxu0 0.0
        %1618 = vmatpush1.msra.mxu0 0.0
        %1619 = vmatprep.subr.mxu0 0.0
        %1620 = vmatpush1.msra.mxu0 0.0
        %1621 = vmatprep.subr.mxu0 0.0
        %1622 = vmatpush1.msra.mxu0 0.0
        %1623 = vmatprep.subr.mxu0 0.0
        %1624 = vmatpush1.msra.mxu0 0.0
        %1625 = vmatprep.subr.mxu0 0.0
        %1626 = vmatpush1.msra.mxu0 0.0
        %1627 = vmatprep.subr.mxu0 0.0
        %1628 = vmatpush1.msra.mxu0 0.0
        %1629 = vmatprep.subr.mxu0 0.0
        %1630 = vmatpush1.msra.mxu0 0.0
        %1631 = vmatprep.subr.mxu0 0.0
        %1632 = vmatpush1.msra.mxu0 0.0
        %1633 = vmatprep.subr.mxu0 0.0
        %1634 = vmatpush1.msra.mxu0 0.0
        %1635 = vmatprep.subr.mxu0 0.0
        %1636 = vmatpush1.msra.mxu0 0.0
        %1637 = vmatprep.subr.mxu0 0.0
        %1638 = vmatpush1.msra.mxu0 0.0
        %1639 = vmatprep.subr.mxu0 0.0
        %1640 = vmatpush1.msra.mxu0 0.0
        %1641 = vmatprep.subr.mxu0 0.0
        %1642 = vmatpush1.msra.mxu0 0.0
        %1643 = vmatprep.subr.mxu0 0.0
        %1644 = vmatpush1.msra.mxu0 0.0
        %1645 = vmatprep.subr.mxu0 0.0
        %1646 = vmatpush1.msra.mxu0 0.0
        %1647 = vmatprep.subr.mxu0 0.0
        %1648 = vmatpush1.msra.mxu0 0.0
        %1649 = vmatprep.subr.mxu0 0.0
        %1650 = vmatpush1.msra.mxu0 0.0
        %1651 = vmatprep.subr.mxu0 0.0
        %1652 = vmatpush1.msra.mxu0 0.0
        %1653 = vmatprep.mubr.f32.mxu0 0.0
        %1654 = vmatmul.mubr.f32.gmra.mrb[0].mxu0 %v1587
        %v1655 = vpop.f32.mrb[0].mxu0
        %v1656 = vadd.f32 0.0, %v1655
        %v1657 = vpop.f32.mrb[0].mxu0
        %1658 = vdwg.mxu0
        %v1659 = vadd.f32 %v1398, %v1656
        %1660 = vrot.lane.b32.xlu0 %v870, 104
        %v1661 = vpop.permute.xlu0 %1660
        %1662 = vrot.lane.b32.xlu0 %v794, 72
        %v1663 = vpop.permute.xlu0 %1662
        %v1664 = vsel %vm880, %v1661, 0
        %v1666 = vsel %vm880, %v1663, 0
        %1668 = vmatprep.subr.mxu0 0.0
        %1669 = vmatpush1.xpose.msra.mxu0 %v1666
        %1670 = vmatprep.subr.mxu0 0.0
        %1671 = vmatpush1.xpose.msra.mxu0 0.0
        %1672 = vmatprep.subr.mxu0 0.0
        %1673 = vmatpush1.xpose.msra.mxu0 0.0
        %1674 = vmatprep.subr.mxu0 0.0
        %1675 = vmatpush1.xpose.msra.mxu0 0.0
        %1676 = vmatprep.subr.mxu0 0.0
        %1677 = vmatpush1.xpose.msra.mxu0 0.0
        %1678 = vmatprep.subr.mxu0 0.0
        %1679 = vmatpush1.xpose.msra.mxu0 0.0
        %1680 = vmatprep.subr.mxu0 0.0
        %1681 = vmatpush1.xpose.msra.mxu0 0.0
        %1682 = vmatprep.subr.mxu0 0.0
        %1683 = vmatpush1.xpose.msra.mxu0 0.0
        %1684 = vmatprep.subr.mxu0 0.0
        %1685 = vmatpush1.xpose.msra.mxu0 0.0
        %1686 = vmatprep.subr.mxu0 0.0
        %1687 = vmatpush1.xpose.msra.mxu0 0.0
        %1688 = vmatprep.subr.mxu0 0.0
        %1689 = vmatpush1.xpose.msra.mxu0 0.0
        %1690 = vmatprep.subr.mxu0 0.0
        %1691 = vmatpush1.xpose.msra.mxu0 0.0
        %1692 = vmatprep.subr.mxu0 0.0
        %1693 = vmatpush1.xpose.msra.mxu0 0.0
        %1694 = vmatprep.subr.mxu0 0.0
        %1695 = vmatpush1.xpose.msra.mxu0 0.0
        %1696 = vmatprep.subr.mxu0 0.0
        %1697 = vmatpush1.xpose.msra.mxu0 0.0
        %1698 = vmatprep.subr.mxu0 0.0
        %1699 = vmatpush1.xpose.msra.mxu0 0.0
        %1700 = vmatprep.subr.mxu0 0.0
        %1701 = vmatpush1.xpose.msra.mxu0 0.0
        %1702 = vmatprep.subr.mxu0 0.0
        %1703 = vmatpush1.xpose.msra.mxu0 0.0
        %1704 = vmatprep.subr.mxu0 0.0
        %1705 = vmatpush1.xpose.msra.mxu0 0.0
        %1706 = vmatprep.subr.mxu0 0.0
        %1707 = vmatpush1.xpose.msra.mxu0 0.0
        %1708 = vmatprep.subr.mxu0 0.0
        %1709 = vmatpush1.xpose.msra.mxu0 0.0
        %1710 = vmatprep.subr.mxu0 0.0
        %1711 = vmatpush1.xpose.msra.mxu0 0.0
        %1712 = vmatprep.subr.mxu0 0.0
        %1713 = vmatpush1.xpose.msra.mxu0 0.0
        %1714 = vmatprep.subr.mxu0 0.0
        %1715 = vmatpush1.xpose.msra.mxu0 0.0
        %1716 = vmatprep.subr.mxu0 0.0
        %1717 = vmatpush1.xpose.msra.mxu0 0.0
        %1718 = vmatprep.subr.mxu0 0.0
        %1719 = vmatpush1.xpose.msra.mxu0 0.0
        %1720 = vmatprep.subr.mxu0 0.0
        %1721 = vmatpush1.xpose.msra.mxu0 0.0
        %1722 = vmatprep.subr.mxu0 0.0
        %1723 = vmatpush1.xpose.msra.mxu0 0.0
        %1724 = vmatprep.subr.mxu0 0.0
        %1725 = vmatpush1.xpose.msra.mxu0 0.0
        %1726 = vmatprep.subr.mxu0 0.0
        %1727 = vmatpush1.xpose.msra.mxu0 0.0
        %1728 = vmatprep.subr.mxu0 0.0
        %1729 = vmatpush1.xpose.msra.mxu0 0.0
        %1730 = vmatprep.subr.mxu0 0.0
        %1731 = vmatpush1.xpose.msra.mxu0 0.0
        %1732 = vmatprep.mubr.f32.mxu0 0.0
        %1733 = vmatmul.mubr.f32.gmra.mrb[0].mxu0 %v1664
        %v1734 = vpop.f32.mrb[0].mxu0
        %v1735 = vadd.f32 %v876, %v1734
        %v1736 = vpop.f32.mrb[0].mxu0
        %1737 = vdwg.mxu0
        %1738 = vrot.lane.b32.xlu0 %v964, 104
        %v1739 = vpop.permute.xlu0 %1738
        %v1741 = vsel %vm880, %v1739, 0.0
        %1742 = vadd.xlane.f32.xlu0 %v1741
        %v1743 = vpop.xlane.xlu0 %1742
        %v1744 = vsel %vm880, %v1735, -inf
        %1745 = vmax.xlane.f32.xlu0 %v1744
        %v1746 = vpop.xlane.xlu0 %1745
        %v1747 = vmax.f32 %v1746, %v1743
        %v1748 = vsub.f32 %v1735, %v1747
        %v1749 = vmul.f32 %v1748, 1.442695
        %v1750 = vpow.pop %v1749
        %v1751 = vsub.f32 %v1743, %v1747
        %v1752 = vmul.f32 %v1751, 1.442695
        %v1753 = vpow.pop %v1752
        %v1754 = vsel %vm880, %v1750, 0.0
        %1755 = vadd.xlane.f32.xlu0 %v1754
        %v1756 = vpop.xlane.xlu0 %1755
        %v1757 = vadd.f32 %v1756, %v1753
        %v1758 = vrcp.pop %v1757
        %v1759 = vmul.f32 %v1757, %v1758
        %v1760 = vsub.f32 2.0, %v1759
        %v1761 = vmul.f32 %v1758, %v1760
        %v1762 = vmul.f32 %v1753, %v959
        %1763 = vrot.lane.b32.xlu0 %v794, 40
        %v1764 = vpop.permute.xlu0 %1763
        %1767 = vrot.lane.b32.xlu0 %v1762, 40
        %v1768 = vpop.permute.xlu0 %1767
        %v1771 = vsel %vm880, %v1750, 0
        %1773 = vmatprep.subr.mxu0 0.0
        %1774 = vmatpush1.msra.mxu0 %v1764
        %1775 = vmatprep.subr.mxu0 0.0
        %1776 = vmatpush1.msra.mxu0 0.0
        %1777 = vmatprep.subr.mxu0 0.0
        %1778 = vmatpush1.msra.mxu0 0.0
        %1779 = vmatprep.subr.mxu0 0.0
        %1780 = vmatpush1.msra.mxu0 0.0
        %1781 = vmatprep.subr.mxu0 0.0
        %1782 = vmatpush1.msra.mxu0 0.0
        %1783 = vmatprep.subr.mxu0 0.0
        %1784 = vmatpush1.msra.mxu0 0.0
        %1785 = vmatprep.subr.mxu0 0.0
        %1786 = vmatpush1.msra.mxu0 0.0
        %1787 = vmatprep.subr.mxu0 0.0
        %1788 = vmatpush1.msra.mxu0 0.0
        %1789 = vmatprep.subr.mxu0 0.0
        %1790 = vmatpush1.msra.mxu0 0.0
        %1791 = vmatprep.subr.mxu0 0.0
        %1792 = vmatpush1.msra.mxu0 0.0
        %1793 = vmatprep.subr.mxu0 0.0
        %1794 = vmatpush1.msra.mxu0 0.0
        %1795 = vmatprep.subr.mxu0 0.0
        %1796 = vmatpush1.msra.mxu0 0.0
        %1797 = vmatprep.subr.mxu0 0.0
        %1798 = vmatpush1.msra.mxu0 0.0
        %1799 = vmatprep.subr.mxu0 0.0
        %1800 = vmatpush1.msra.mxu0 0.0
        %1801 = vmatprep.subr.mxu0 0.0
        %1802 = vmatpush1.msra.mxu0 0.0
        %1803 = vmatprep.subr.mxu0 0.0
        %1804 = vmatpush1.msra.mxu0 0.0
        %1805 = vmatprep.subr.mxu0 0.0
        %1806 = vmatpush1.msra.mxu0 0.0
        %1807 = vmatprep.subr.mxu0 0.0
        %1808 = vmatpush1.msra.mxu0 0.0
        %1809 = vmatprep.subr.mxu0 0.0
        %1810 = vmatpush1.msra.mxu0 0.0
        %1811 = vmatprep.subr.mxu0 0.0
        %1812 = vmatpush1.msra.mxu0 0.0
        %1813 = vmatprep.subr.mxu0 0.0
        %1814 = vmatpush1.msra.mxu0 0.0
        %1815 = vmatprep.subr.mxu0 0.0
        %1816 = vmatpush1.msra.mxu0 0.0
        %1817 = vmatprep.subr.mxu0 0.0
        %1818 = vmatpush1.msra.mxu0 0.0
        %1819 = vmatprep.subr.mxu0 0.0
        %1820 = vmatpush1.msra.mxu0 0.0
        %1821 = vmatprep.subr.mxu0 0.0
        %1822 = vmatpush1.msra.mxu0 0.0
        %1823 = vmatprep.subr.mxu0 0.0
        %1824 = vmatpush1.msra.mxu0 0.0
        %1825 = vmatprep.subr.mxu0 0.0
        %1826 = vmatpush1.msra.mxu0 0.0
        %1827 = vmatprep.subr.mxu0 0.0
        %1828 = vmatpush1.msra.mxu0 0.0
        %1829 = vmatprep.subr.mxu0 0.0
        %1830 = vmatpush1.msra.mxu0 0.0
        %1831 = vmatprep.subr.mxu0 0.0
        %1832 = vmatpush1.msra.mxu0 0.0
        %1833 = vmatprep.subr.mxu0 0.0
        %1834 = vmatpush1.msra.mxu0 0.0
        %1835 = vmatprep.subr.mxu0 0.0
        %1836 = vmatpush1.msra.mxu0 0.0
        %1837 = vmatprep.mubr.f32.mxu0 0.0
        %1838 = vmatmul.mubr.f32.gmra.mrb[0].mxu0 %v1771
        %v1839 = vpop.f32.mrb[0].mxu0
        %v1840 = vadd.f32 %v1768, %v1839
        %v1841 = vpop.f32.mrb[0].mxu0
        %1842 = vdwg.mxu0
        %v1843 = vmul.f32 %v1840, %v1761
        %v1844 = vld [vmem:[%s10 + $0x18] sm:$0xff]
        %v1846 = vsel %vm880, %v1843, 0
        %1848 = vmatprep.subr.mxu0 0.0
        %1849 = vmatpush1.msra.mxu0 %v1844
        %1850 = vmatprep.subr.mxu0 0.0
        %1851 = vmatpush1.msra.mxu0 0.0
        %1852 = vmatprep.subr.mxu0 0.0
        %1853 = vmatpush1.msra.mxu0 0.0
        %1854 = vmatprep.subr.mxu0 0.0
        %1855 = vmatpush1.msra.mxu0 0.0
        %1856 = vmatprep.subr.mxu0 0.0
        %1857 = vmatpush1.msra.mxu0 0.0
        %1858 = vmatprep.subr.mxu0 0.0
        %1859 = vmatpush1.msra.mxu0 0.0
        %1860 = vmatprep.subr.mxu0 0.0
        %1861 = vmatpush1.msra.mxu0 0.0
        %1862 = vmatprep.subr.mxu0 0.0
        %1863 = vmatpush1.msra.mxu0 0.0
        %1864 = vmatprep.subr.mxu0 0.0
        %1865 = vmatpush1.msra.mxu0 0.0
        %1866 = vmatprep.subr.mxu0 0.0
        %1867 = vmatpush1.msra.mxu0 0.0
        %1868 = vmatprep.subr.mxu0 0.0
        %1869 = vmatpush1.msra.mxu0 0.0
        %1870 = vmatprep.subr.mxu0 0.0
        %1871 = vmatpush1.msra.mxu0 0.0
        %1872 = vmatprep.subr.mxu0 0.0
        %1873 = vmatpush1.msra.mxu0 0.0
        %1874 = vmatprep.subr.mxu0 0.0
        %1875 = vmatpush1.msra.mxu0 0.0
        %1876 = vmatprep.subr.mxu0 0.0
        %1877 = vmatpush1.msra.mxu0 0.0
        %1878 = vmatprep.subr.mxu0 0.0
        %1879 = vmatpush1.msra.mxu0 0.0
        %1880 = vmatprep.subr.mxu0 0.0
        %1881 = vmatpush1.msra.mxu0 0.0
        %1882 = vmatprep.subr.mxu0 0.0
        %1883 = vmatpush1.msra.mxu0 0.0
        %1884 = vmatprep.subr.mxu0 0.0
        %1885 = vmatpush1.msra.mxu0 0.0
        %1886 = vmatprep.subr.mxu0 0.0
        %1887 = vmatpush1.msra.mxu0 0.0
        %1888 = vmatprep.subr.mxu0 0.0
        %1889 = vmatpush1.msra.mxu0 0.0
        %1890 = vmatprep.subr.mxu0 0.0
        %1891 = vmatpush1.msra.mxu0 0.0
        %1892 = vmatprep.subr.mxu0 0.0
        %1893 = vmatpush1.msra.mxu0 0.0
        %1894 = vmatprep.subr.mxu0 0.0
        %1895 = vmatpush1.msra.mxu0 0.0
        %1896 = vmatprep.subr.mxu0 0.0
        %1897 = vmatpush1.msra.mxu0 0.0
        %1898 = vmatprep.subr.mxu0 0.0
        %1899 = vmatpush1.msra.mxu0 0.0
        %1900 = vmatprep.subr.mxu0 0.0
        %1901 = vmatpush1.msra.mxu0 0.0
        %1902 = vmatprep.subr.mxu0 0.0
        %1903 = vmatpush1.msra.mxu0 0.0
        %1904 = vmatprep.subr.mxu0 0.0
        %1905 = vmatpush1.msra.mxu0 0.0
        %1906 = vmatprep.subr.mxu0 0.0
        %1907 = vmatpush1.msra.mxu0 0.0
        %1908 = vmatprep.subr.mxu0 0.0
        %1909 = vmatpush1.msra.mxu0 0.0
        %1910 = vmatprep.subr.mxu0 0.0
        %1911 = vmatpush1.msra.mxu0 0.0
        %1912 = vmatprep.mubr.f32.mxu0 0.0
        %1913 = vmatmul.mubr.f32.gmra.mrb[0].mxu0 %v1846
        %v1914 = vpop.f32.mrb[0].mxu0
        %v1915 = vadd.f32 0.0, %v1914
        %v1916 = vpop.f32.mrb[0].mxu0
        %1917 = vdwg.mxu0
        %v1918 = vadd.f32 %v1659, %v1915
        %v1919 = vld [vmem:[%s11] sm:$0x1]
        %v1921 = vlaneseq
        %v1922 = vshrl.u32 %v1921, 7
        %v1923 = vsub.s32 0, %v1922
        %v1924 = vrot.slane %v1919, %v1923
        %v1926 = vadd.f32 %v1918, %v1924
        %v1927 = vadd.f32 %v1926, %v585
        %v1928 = vld [vmem:[%s12] sm:$0x1]
        %v1929 = vld [vmem:[%s13] sm:$0x1]
        %v1930 = vsel %vm588, %v1927, 0.0
        %1931 = vadd.xlane.f32.xlu0 %v1930
        %v1932 = vpop.xlane.xlu0 %1931
        %v1933 = vmul.f32 %v1932, %v592
        %v1934 = vsub.f32 %v1927, %v1933
        %v1935 = vmul.f32 %v1934, %v1934
        %v1936 = vsel %vm588, %v1935, 0.0
        %1937 = vadd.xlane.f32.xlu0 %v1936
        %v1938 = vpop.xlane.xlu0 %1937
        %v1939 = vmul.f32 %v1938, %v592
        %v1940 = vadd.f32 %v1939, 1e-05
        %v1941 = vrsqrt.pop %v1940
        %v1942 = vmul.f32 %v1934, %v1941
        %v1944 = vlaneseq
        %v1945 = vshrl.u32 %v1944, 7
        %v1946 = vsub.s32 0, %v1945
        %v1947 = vrot.slane %v1928, %v1946
        %v1949 = vmul.f32 %v1942, %v1947
        %v1951 = vlaneseq
        %v1952 = vshrl.u32 %v1951, 7
        %v1953 = vsub.s32 0, %v1952
        %v1954 = vrot.slane %v1929, %v1953
        %v1956 = vadd.f32 %v1949, %v1954
        %v1957 = vld [vmem:[%s14] sm:$0xff]
        %v1958 = vld [vmem:[%s14 + $0x8] sm:$0xff]
        %v1959 = vld [vmem:[%s14 + $0x10] sm:$0xff]
        %v1960 = vld [vmem:[%s14 + $0x18] sm:$0xff]
        %v1961 = vld [vmem:[%s15] sm:$0x1]
        %v1963 = vlaneseq
        %v1964 = vshrl.u32 %v1963, 7
        %v1965 = vsub.s32 0, %v1964
        %v1966 = vrot.slane %v1961, %v1965
        %v1969 = vsel %vm588, %v1956, 0
        %1971 = vmatprep.subr.mxu0 0.0
        %1972 = vmatpush1.msra.mxu0 %v1957
        %1973 = vmatprep.subr.mxu0 0.0
        %1974 = vmatpush1.msra.mxu0 %v1958
        %1975 = vmatprep.subr.mxu0 0.0
        %1976 = vmatpush1.msra.mxu0 %v1959
        %1977 = vmatprep.subr.mxu0 0.0
        %1978 = vmatpush1.msra.mxu0 %v1960
        %1979 = vmatprep.subr.mxu0 0.0
        %1980 = vmatpush1.msra.mxu0 0.0
        %1981 = vmatprep.subr.mxu0 0.0
        %1982 = vmatpush1.msra.mxu0 0.0
        %1983 = vmatprep.subr.mxu0 0.0
        %1984 = vmatpush1.msra.mxu0 0.0
        %1985 = vmatprep.subr.mxu0 0.0
        %1986 = vmatpush1.msra.mxu0 0.0
        %1987 = vmatprep.subr.mxu0 0.0
        %1988 = vmatpush1.msra.mxu0 0.0
        %1989 = vmatprep.subr.mxu0 0.0
        %1990 = vmatpush1.msra.mxu0 0.0
        %1991 = vmatprep.subr.mxu0 0.0
        %1992 = vmatpush1.msra.mxu0 0.0
        %1993 = vmatprep.subr.mxu0 0.0
        %1994 = vmatpush1.msra.mxu0 0.0
        %1995 = vmatprep.subr.mxu0 0.0
        %1996 = vmatpush1.msra.mxu0 0.0
        %1997 = vmatprep.subr.mxu0 0.0
        %1998 = vmatpush1.msra.mxu0 0.0
        %1999 = vmatprep.subr.mxu0 0.0
        %2000 = vmatpush1.msra.mxu0 0.0
        %2001 = vmatprep.subr.mxu0 0.0
        %2002 = vmatpush1.msra.mxu0 0.0
        %2003 = vmatprep.subr.mxu0 0.0
        %2004 = vmatpush1.msra.mxu0 0.0
        %2005 = vmatprep.subr.mxu0 0.0
        %2006 = vmatpush1.msra.mxu0 0.0
        %2007 = vmatprep.subr.mxu0 0.0
        %2008 = vmatpush1.msra.mxu0 0.0
        %2009 = vmatprep.subr.mxu0 0.0
        %2010 = vmatpush1.msra.mxu0 0.0
        %2011 = vmatprep.subr.mxu0 0.0
        %2012 = vmatpush1.msra.mxu0 0.0
        %2013 = vmatprep.subr.mxu0 0.0
        %2014 = vmatpush1.msra.mxu0 0.0
        %2015 = vmatprep.subr.mxu0 0.0
        %2016 = vmatpush1.msra.mxu0 0.0
        %2017 = vmatprep.subr.mxu0 0.0
        %2018 = vmatpush1.msra.mxu0 0.0
        %2019 = vmatprep.subr.mxu0 0.0
        %2020 = vmatpush1.msra.mxu0 0.0
        %2021 = vmatprep.subr.mxu0 0.0
        %2022 = vmatpush1.msra.mxu0 0.0
        %2023 = vmatprep.subr.mxu0 0.0
        %2024 = vmatpush1.msra.mxu0 0.0
        %2025 = vmatprep.subr.mxu0 0.0
        %2026 = vmatpush1.msra.mxu0 0.0
        %2027 = vmatprep.subr.mxu0 0.0
        %2028 = vmatpush1.msra.mxu0 0.0
        %2029 = vmatprep.subr.mxu0 0.0
        %2030 = vmatpush1.msra.mxu0 0.0
        %2031 = vmatprep.subr.mxu0 0.0
        %2032 = vmatpush1.msra.mxu0 0.0
        %2033 = vmatprep.subr.mxu0 0.0
        %2034 = vmatpush1.msra.mxu0 0.0
        %2035 = vmatprep.mubr.f32.mxu0 0.0
        %2036 = vmatmul.mubr.f32.gmra.mrb[0].mxu0 %v1969
        %v2037 = vpop.f32.mrb[0].mxu0
        %v2038 = vadd.f32 %v1966, %v2037
        %v2039 = vpop.f32.mrb[0].mxu0
        %2040 = vdwg.mxu0
        %v2041 = vmul.f32 %v2038, 0.5
        %v2042 = vmul.f32 %v2038, %v2038
        %v2043 = vmul.f32 %v2038, %v2042
        %v2044 = vmul.f32 %v2043, 0.044715
        %v2045 = vadd.f32 %v2038, %v2044
        %v2046 = vmul.f32 %v2045, 0.7978845
        %v2047 = vtanh.pop %v2046
        %v2048 = vadd.f32 %v2047, 1.0
        %v2049 = vmul.f32 %v2041, %v2048
        %v2050 = vld [vmem:[%s16] sm:$0xff]
        %v2051 = vld [vmem:[%s16 + $0x8] sm:$0xff]
        %v2052 = vld [vmem:[%s16 + $0x10] sm:$0xff]
        %v2053 = vld [vmem:[%s16 + $0x18] sm:$0xff]
        %v2054 = vld [vmem:[%s16 + $0x20] sm:$0xff]
        %v2055 = vld [vmem:[%s16 + $0x28] sm:$0xff]
        %v2056 = vld [vmem:[%s16 + $0x30] sm:$0xff]
        %v2057 = vld [vmem:[%s16 + $0x38] sm:$0xff]
        %v2058 = vld [vmem:[%s16 + $0x40] sm:$0xff]
        %v2059 = vld [vmem:[%s16 + $0x48] sm:$0xff]
        %v2060 = vld [vmem:[%s16 + $0x50] sm:$0xff]
        %v2061 = vld [vmem:[%s16 + $0x58] sm:$0xff]
        %v2062 = vld [vmem:[%s16 + $0x60] sm:$0xff]
        %v2063 = vld [vmem:[%s16 + $0x68] sm:$0xff]
        %v2064 = vld [vmem:[%s16 + $0x70] sm:$0xff]
        %v2065 = vld [vmem:[%s16 + $0x78] sm:$0xff]
        %v2066 = vld [vmem:[%s17] sm:$0x1]
        %v2068 = vlaneseq
        %v2069 = vshrl.u32 %v2068, 7
        %v2070 = vsub.s32 0, %v2069
        %v2071 = vrot.slane %v2066, %v2070
        %2073 = vmatprep.subr.mxu0 0.0
        %2074 = vmatpush1.msra.mxu0 %v2050
        %2075 = vmatprep.subr.mxu0 0.0
        %2076 = vmatpush1.msra.mxu0 %v2051
        %2077 = vmatprep.subr.mxu0 0.0
        %2078 = vmatpush1.msra.mxu0 %v2052
        %2079 = vmatprep.subr.mxu0 0.0
        %2080 = vmatpush1.msra.mxu0 %v2053
        %2081 = vmatprep.subr.mxu0 0.0
        %2082 = vmatpush1.msra.mxu0 %v2054
        %2083 = vmatprep.subr.mxu0 0.0
        %2084 = vmatpush1.msra.mxu0 %v2055
        %2085 = vmatprep.subr.mxu0 0.0
        %2086 = vmatpush1.msra.mxu0 %v2056
        %2087 = vmatprep.subr.mxu0 0.0
        %2088 = vmatpush1.msra.mxu0 %v2057
        %2089 = vmatprep.subr.mxu0 0.0
        %2090 = vmatpush1.msra.mxu0 %v2058
        %2091 = vmatprep.subr.mxu0 0.0
        %2092 = vmatpush1.msra.mxu0 %v2059
        %2093 = vmatprep.subr.mxu0 0.0
        %2094 = vmatpush1.msra.mxu0 %v2060
        %2095 = vmatprep.subr.mxu0 0.0
        %2096 = vmatpush1.msra.mxu0 %v2061
        %2097 = vmatprep.subr.mxu0 0.0
        %2098 = vmatpush1.msra.mxu0 %v2062
        %2099 = vmatprep.subr.mxu0 0.0
        %2100 = vmatpush1.msra.mxu0 %v2063
        %2101 = vmatprep.subr.mxu0 0.0
        %2102 = vmatpush1.msra.mxu0 %v2064
        %2103 = vmatprep.subr.mxu0 0.0
        %2104 = vmatpush1.msra.mxu0 %v2065
        %2105 = vmatprep.subr.mxu0 0.0
        %2106 = vmatpush1.msra.mxu0 0.0
        %2107 = vmatprep.subr.mxu0 0.0
        %2108 = vmatpush1.msra.mxu0 0.0
        %2109 = vmatprep.subr.mxu0 0.0
        %2110 = vmatpush1.msra.mxu0 0.0
        %2111 = vmatprep.subr.mxu0 0.0
        %2112 = vmatpush1.msra.mxu0 0.0
        %2113 = vmatprep.subr.mxu0 0.0
        %2114 = vmatpush1.msra.mxu0 0.0
        %2115 = vmatprep.subr.mxu0 0.0
        %2116 = vmatpush1.msra.mxu0 0.0
        %2117 = vmatprep.subr.mxu0 0.0
        %2118 = vmatpush1.msra.mxu0 0.0
        %2119 = vmatprep.subr.mxu0 0.0
        %2120 = vmatpush1.msra.mxu0 0.0
        %2121 = vmatprep.subr.mxu0 0.0
        %2122 = vmatpush1.msra.mxu0 0.0
        %2123 = vmatprep.subr.mxu0 0.0
        %2124 = vmatpush1.msra.mxu0 0.0
        %2125 = vmatprep.subr.mxu0 0.0
        %2126 = vmatpush1.msra.mxu0 0.0
        %2127 = vmatprep.subr.mxu0 0.0
        %2128 = vmatpush1.msra.mxu0 0.0
        %2129 = vmatprep.subr.mxu0 0.0
        %2130 = vmatpush1.msra.mxu0 0.0
        %2131 = vmatprep.subr.mxu0 0.0
        %2132 = vmatpush1.msra.mxu0 0.0
        %2133 = vmatprep.subr.mxu0 0.0
        %2134 = vmatpush1.msra.mxu0 0.0
        %2135 = vmatprep.subr.mxu0 0.0
        %2136 = vmatpush1.msra.mxu0 0.0
        %2137 = vmatprep.mubr.f32.mxu0 0.0
        %2138 = vmatmul.mubr.f32.gmra.mrb[0].mxu0 %v2049
        %v2139 = vpop.f32.mrb[0].mxu0
        %v2140 = vadd.f32 %v2071, %v2139
        %v2141 = vpop.f32.mrb[0].mxu0
        %2142 = vdwg.mxu0
        %v2143 = vadd.f32 %v1927, %v2140
        %2144 = vst.msk [vmem:[%s577] sm:$0xff] %vm588, %v2143
        %s2145 = sand.u32 %s428, 1
        %s2146 = scalar_lea.sflag [#allocation3], %s2145
        %s2147 = sand.u32 %s428, 1
        %s2148 = smul.addr %s2147, 8
        %s2149 = scalar_lea.vmem [#allocation2], %s2148
        // Predicated region
        $region93: #{tpu_custom_call.1} parent=91 // pred_check
          %p2150 = pneg %p438
        $region94: #{tpu_custom_call.1} parent=91 // pred_check_branch
          %2152 = sbr.rel (%p2150) target = $region96
        $region95: #{tpu_custom_call.1} parent=91 // pred_region
          %s2154 = ssub.s32 128, 128
          %2155 = vsyncadd %s2146, %s2154
          %s2156 = smul.addr %s32, 128
          %s2157 = scalar_lea.hbm %s18, %s2156
          %s2159 = sshll.u32 %s2149, 4
          %s2160 = int_to_ptr.vmem [resolvable:$true] %s2159
          %2162 = dma.vmem_to_hbm [thread:$0]  %s2160, 128, %s2157, %s2146
        $region96: #{tpu_custom_call.1} parent=91 // pred_fallthru
          _
      $region92: #{tpu_custom_call.1} parent=5 // pred_fallthru
        _
      %p2163 = scmp.le.s32.totalorder 2, %s27
      // Predicated region
      $region97: #{tpu_custom_call.1} parent=5 // pred_check
        %p2164 = pneg %p2163
      $region98: #{tpu_custom_call.1} parent=5 // pred_check_branch
        %2166 = sbr.rel (%p2164) target = $region100
      $region99: #{tpu_custom_call.1} parent=5 // pred_region
        %s2167 = ssub.s32 %s27, 2
        // Predicated region
        $region101: #{tpu_custom_call.1} parent=99 // pred_check
          %p2168 = pneg %p444
        $region102: #{tpu_custom_call.1} parent=99 // pred_check_branch
          %2170 = sbr.rel (%p2168) target = $region104
        $region103: #{tpu_custom_call.1} parent=99 // pred_region
          %s2171 = sand.u32 %s429, 1
          %s2172 = scalar_lea.sflag [#allocation3], %s2171
          %s2173 = sand.u32 %s429, 1
          %s2174 = smul.addr %s2173, 8
          %s2175 = scalar_lea.vmem [#allocation2], %s2174
          %2176 = dma.done %s2172, 128
        $region104: #{tpu_custom_call.1} parent=99 // pred_fallthru
          _
      $region100: #{tpu_custom_call.1} parent=5 // pred_fallthru
        _
    $region6: #{tpu_custom_call.1} parent=1 // loop_footer
      %s31 = sadd.s32 1, %s27
    $region7: #{tpu_custom_call.1} parent=1 // loop_footer_branch
      %26 = sbr.rel target = $region3
    $region8: #{tpu_custom_call.1} parent=1 // loop_exit
      _
    %2177 = vsyncpa [#allocation3], 1
    %s2178 = scalar_lea.sflag [#allocation3], 1
    %2179 = vsyncpa %s2178, 1

</llo_original>
